<compile_context>
chip_gen: v7x
topology: tpu7x:2x2x1
jax: 0.10.0
libtpu: 0.0.40
codegen_flags: <defaults>
</compile_context>

<pallas_src>
import functools
import math

import jax
import jax.numpy as jnp
from jax import lax
from jax.experimental import pallas as pl
from jax.experimental.pallas import tpu as pltpu

# ----------------------- small synthetic ViT config -------------------------
EMBED_DIM = 32      # (real "base" = 768)
DEPTH = 2           # (real "base" = 12)
NUM_HEADS = 4       # (real "base" = 12)
PATCH = 4           # (real = 14)
MLP_RATIO = 4
IN_CHANS = 3
EPS = 1e-6
INV_SQRT2 = 1.0 / math.sqrt(2.0)


# ----------------------------- in-kernel helpers ----------------------------
def _ln(x, g, b):
    # LayerNorm over the last dim (biased variance, matches torch.nn.LayerNorm).
    mu = jnp.mean(x, axis=-1, keepdims=True)
    xc = x - mu
    var = jnp.mean(xc * xc, axis=-1, keepdims=True)
    return xc * lax.rsqrt(var + EPS) * g + b


def _gelu_exact(x):
    return 0.5 * x * (1.0 + lax.erf(x * INV_SQRT2))


def _dot(a, b):
    # bf16 x bf16 -> f32 MXU matmul.
    return jnp.dot(a.astype(jnp.bfloat16), b, preferred_element_type=jnp.float32)


def _dot_t(a, b):
    # a @ b.T (both bf16) without materializing the transpose.
    return lax.dot_general(a, b, (((1,), (1,)), ((), ())),
                           preferred_element_type=jnp.float32)


# --------------------------- fused forward kernel ----------------------------
def _vit_kernel(patches_ref, w_patch_ref, tok_add_ref,
                w_qkv_ref, b_qkv_ref, w_proj_ref, b_proj_ref, ls1_ref,
                n1g_ref, n1b_ref, n2g_ref, n2b_ref,
                w_fc1_ref, b_fc1_ref, w_fc2_ref, b_fc2_ref, ls2_ref,
                normg_ref, normb_ref,
                out_ref, tok_ref, *, num_heads):
    layer = pl.program_id(1)
    last = pl.num_programs(1) - 1

    # ---- layer 0: patch-embed matmul + CLS prepend + pos-embed add ----------
    @pl.when(layer == 0)
    def _():
        # Only the P patch rows are matmul'ed; the CLS row is tok_add row 0
        # (cls_token + pos_embed[0], no patch bias).
        ptok = _dot(patches_ref[0], w_patch_ref[...])                  # (P, D) f32
        cls0 = jnp.zeros((1, ptok.shape[1]), jnp.float32)
        tok_ref[...] = jnp.concatenate([cls0, ptok], axis=0) + tok_add_ref[...]

    x = tok_ref[...]                               # (T, D) f32 residual stream
    t, d = x.shape
    dh = d // num_heads
    scale = dh ** -0.5

    # ---- LN1 fused with QKV projection --------------------------------------
    h = _ln(x, n1g_ref[0], n1b_ref[0])
    qkv = _dot(h, w_qkv_ref[0]) + b_qkv_ref[0]                         # (T, 3D) f32

    q = (qkv[:, 0:d] * scale).astype(jnp.bfloat16)
    k = qkv[:, d:2 * d].astype(jnp.bfloat16)
    v = qkv[:, 2 * d:3 * d].astype(jnp.bfloat16)

    # ---- multi-head attention (exact softmax), heads concatenated on lanes --
    # TODO(synk): at real config (12 heads) switch to a head-batched dot_general
    # or lax.fori_loop to bound live ranges; H=4 static unroll is fine here.
    heads = []
    for hi in range(num_heads):
        sl = slice(hi * dh, (hi + 1) * dh)
        s = _dot_t(q[:, sl], k[:, sl])                                 # (T, T) f32
        s = s - jnp.max(s, axis=-1, keepdims=True)
        e = jnp.exp(s)
        p = e / jnp.sum(e, axis=-1, keepdims=True)
        heads.append(_dot(p, v[:, sl]))                                # (T, Dh) f32
    attn = jnp.concatenate(heads, axis=-1)                             # (T, D)

    # Single K=D output projection (replaces per-head K=Dh matmuls).
    attn = _dot(attn, w_proj_ref[0]) + b_proj_ref[0]

    # ---- residual + LayerScale1 ----------------------------------------------
    x = x + attn * ls1_ref[0]

    # ---- LN2 + MLP (exact GELU) + LayerScale2 + residual ---------------------
    h = _ln(x, n2g_ref[0], n2b_ref[0])
    h = _dot(h, w_fc1_ref[0]) + b_fc1_ref[0]
    h = _gelu_exact(h)
    h = _dot(h, w_fc2_ref[0]) + b_fc2_ref[0]
    x = x + h * ls2_ref[0]

    tok_ref[...] = x                                # carry to the next layer

    # ---- last layer: final LayerNorm (full slab) + drop CLS ------------------
    @pl.when(layer == last)
    def _():
        xn = _ln(x, normg_ref[...], normb_ref[...])                    # (T, D)
        out_ref[0] = xn[1:, :]                                         # (P, D)


# ------------------------------ pallas wrapper -------------------------------
def dinov2_backbone_forward(prep, x):
    # x: (B, C, H, W) NCHW float32 -> (B, D, H/PATCH, W/PATCH)
    B, C, H, W = x.shape
    Hp, Wp = H // PATCH, W // PATCH
    P = Hp * Wp
    K = C * PATCH * PATCH
    D = EMBED_DIM
    T = P + 1
    HID = MLP_RATIO * D
    L = prep["w_qkv"].shape[0]

    # conv(kernel=stride=PATCH) == unfold + matmul.  Patches go in as bf16.
    patches = x.reshape(B, C, Hp, PATCH, Wp, PATCH)
    patches = patches.transpose(0, 2, 4, 1, 3, 5).reshape(B, P, K)
    patches = patches.astype(jnp.bfloat16)

    def _rep(shape):
        # Whole-array block, resident across all grid steps.
        nd = len(shape)
        return pl.BlockSpec(shape, lambda b, l, nd=nd: (0,) * nd)

    def _lyr(shape):
        # Per-layer stacked weight: leading DEPTH axis follows the depth grid axis.
        return pl.BlockSpec((1,) + tuple(shape[1:]), lambda b, l: (l, 0, 0))

    kern = functools.partial(_vit_kernel, num_heads=NUM_HEADS)

    out = pl.pallas_call(
        kern,
        out_shape=jax.ShapeDtypeStruct((B, P, D), jnp.float32),
        grid=(B, L),
        in_specs=[
            pl.BlockSpec((1, P, K), lambda b, l: (b, 0, 0)),   # patches (per batch)
            _rep((K, D)),                                      # patch-embed weight
            _rep((T, D)),                                      # cls/pos/bias add slab
            _lyr((L, D, 3 * D)), _lyr((L, 1, 3 * D)),          # qkv  w, b
            _lyr((L, D, D)), _lyr((L, 1, D)),                  # proj w, b
            _lyr((L, 1, D)),                                   # ls1 gamma
            _lyr((L, 1, D)), _lyr((L, 1, D)),                  # norm1 g, b
            _lyr((L, 1, D)), _lyr((L, 1, D)),                  # norm2 g, b
            _lyr((L, D, HID)), _lyr((L, 1, HID)),              # fc1 w, b
            _lyr((L, HID, D)), _lyr((L, 1, D)),                # fc2 w, b
            _lyr((L, 1, D)),                                   # ls2 gamma
            _rep((1, D)), _rep((1, D)),                        # final norm g, b
        ],
        out_specs=pl.BlockSpec((1, P, D), lambda b, l: (b, 0, 0)),
        scratch_shapes=[pltpu.VMEM((T, D), jnp.float32)],      # resident token slab
        compiler_params=pltpu.CompilerParams(
            dimension_semantics=("parallel", "arbitrary")),
    )(patches, prep["w_patch"], prep["tok_add"],
      prep["w_qkv"], prep["b_qkv"], prep["w_proj"], prep["b_proj"], prep["ls1"],
      prep["n1g"], prep["n1b"], prep["n2g"], prep["n2b"],
      prep["w_fc1"], prep["b_fc1"], prep["w_fc2"], prep["b_fc2"], prep["ls2"],
      prep["norm_g"], prep["norm_b"])

    return out.transpose(0, 2, 1).reshape(B, D, Hp, Wp)                # NCHW


# ----------------------------- parameters -----------------------------------
def init_params(key, img_size):
    # PyTorch layouts (Linear = (out, in), Conv2d = (out, in, kh, kw)).
    D = EMBED_DIM
    P = (img_size // PATCH) ** 2
    keys = list(jax.random.split(key, 6 + DEPTH * 12))
    it = iter(keys)

    def nrm(shape, s=0.02):
        return (s * jax.random.normal(next(it), shape)).astype(jnp.float32)

    params = {
        "patch_w": nrm((D, IN_CHANS, PATCH, PATCH)),
        "patch_b": nrm((D,)),
        "cls_token": nrm((1, 1, D)),
        "pos_embed": nrm((1, 1 + P, D)),
        "norm_g": jnp.ones((D,), jnp.float32),
        "norm_b": jnp.zeros((D,), jnp.float32),
        "blocks": [],
    }
    hidden = MLP_RATIO * D
    for _ in range(DEPTH):
        params["blocks"].append({
            "norm1_g": jnp.ones((D,), jnp.float32),
            "norm1_b": jnp.zeros((D,), jnp.float32),
            "qkv_w": nrm((3 * D, D)),
            "qkv_b": nrm((3 * D,)),
            "proj_w": nrm((D, D)),
            "proj_b": nrm((D,)),
            "ls1_g": nrm((D,), s=0.1),
            "norm2_g": jnp.ones((D,), jnp.float32),
            "norm2_b": jnp.zeros((D,), jnp.float32),
            "fc1_w": nrm((hidden, D)),
            "fc1_b": nrm((hidden,)),
            "fc2_w": nrm((D, hidden)),
            "fc2_b": nrm((D,)),
            "ls2_g": nrm((D,), s=0.1),
        })
    return params


def prepare_params(params):
    # One-time conversion to kernel layout:
    #   * matmul weights -> (in, out) and bf16 (MXU-native, half the VMEM/DMA),
    #   * per-layer tensors stacked on a leading (DEPTH, ...) axis,
    #   * biases / norms / layerscales stay f32 (added on the f32 accumulator path),
    #   * additive token slab tok_add = [cls + pos[0] ; pos[1:] + patch_bias].
    D = EMBED_DIM
    K = IN_CHANS * PATCH * PATCH
    hid = MLP_RATIO * D
    pos = params["pos_embed"][0]                       # (T, D)
    cls = params["cls_token"].reshape(1, D)
    pb = params["patch_b"].reshape(1, D)

    def stack(name, fn):
        return jnp.stack([fn(blk[name]) for blk in params["blocks"]], axis=0)

    return {
        "w_patch": params["patch_w"].reshape(D, K).T.astype(jnp.bfloat16),   # (K, D)
        "tok_add": jnp.concatenate([cls + pos[0:1], pos[1:] + pb], axis=0),  # (T, D)
        "norm_g": params["norm_g"].reshape(1, D),
        "norm_b": params["norm_b"].reshape(1, D),
        "w_qkv": stack("qkv_w", lambda w: w.T.astype(jnp.bfloat16)),         # (L, D, 3D)
        "b_qkv": stack("qkv_b", lambda b: b.reshape(1, 3 * D)),
        "w_proj": stack("proj_w", lambda w: w.T.astype(jnp.bfloat16)),       # (L, D, D)
        "b_proj": stack("proj_b", lambda b: b.reshape(1, D)),
        "ls1": stack("ls1_g", lambda g: g.reshape(1, D)),
        "n1g": stack("norm1_g", lambda g: g.reshape(1, D)),
        "n1b": stack("norm1_b", lambda g: g.reshape(1, D)),
        "n2g": stack("norm2_g", lambda g: g.reshape(1, D)),
        "n2b": stack("norm2_b", lambda g: g.reshape(1, D)),
        "w_fc1": stack("fc1_w", lambda w: w.T.astype(jnp.bfloat16)),         # (L, D, hid)
        "b_fc1": stack("fc1_b", lambda b: b.reshape(1, hid)),
        "w_fc2": stack("fc2_w", lambda w: w.T.astype(jnp.bfloat16)),         # (L, hid, D)
        "b_fc2": stack("fc2_b", lambda b: b.reshape(1, D)),
        "ls2": stack("ls2_g", lambda g: g.reshape(1, D)),
    }


# -------------------- pure-JAX reference (PyTorch semantics, f32) ------------
def reference_forward(params, x):
    B, C, H, W = x.shape
    Hp, Wp = H // PATCH, W // PATCH
    P = Hp * Wp
    D = EMBED_DIM
    Dh = D // NUM_HEADS
    T = P + 1
    scale = Dh ** -0.5

    patches = x.reshape(B, C, Hp, PATCH, Wp, PATCH)
    patches = patches.transpose(0, 2, 4, 1, 3, 5).reshape(B, P, C * PATCH * PATCH)
    tok = patches @ params["patch_w"].reshape(D, -1).T + params["patch_b"]
    cls = jnp.broadcast_to(params["cls_token"], (B, 1, D))
    xt = jnp.concatenate([cls, tok], axis=1) + params["pos_embed"]

    def ln(v, g, b):
        mu = v.mean(-1, keepdims=True)
        var = ((v - mu) ** 2).mean(-1, keepdims=True)
        return (v - mu) * lax.rsqrt(var + EPS) * g + b

    for blk in params["blocks"]:
        h = ln(xt, blk["norm1_g"], blk["norm1_b"])
        qkv = h @ blk["qkv_w"].T + blk["qkv_b"]
        qkv = qkv.reshape(B, T, 3, NUM_HEADS, Dh).transpose(2, 0, 3, 1, 4)
        q, k, v = qkv[0] * scale, qkv[1], qkv[2]
        s = q @ k.transpose(0, 1, 3, 2)
        p = jax.nn.softmax(s, axis=-1)
        a = (p @ v).transpose(0, 2, 1, 3).reshape(B, T, D)
        a = a @ blk["proj_w"].T + blk["proj_b"]
        xt = xt + a * blk["ls1_g"]
        h = ln(xt, blk["norm2_g"], blk["norm2_b"])
        h = h @ blk["fc1_w"].T + blk["fc1_b"]
        h = 0.5 * h * (1.0 + lax.erf(h * INV_SQRT2))
        h = h @ blk["fc2_w"].T + blk["fc2_b"]
        xt = xt + h * blk["ls2_g"]

    xt = ln(xt, params["norm_g"], params["norm_b"])
    return xt[:, 1:, :].transpose(0, 2, 1).reshape(B, D, Hp, Wp)


# --------------------------------- main --------------------------------------
if __name__ == "__main__":
    key = jax.random.PRNGKey(0)
    k_params, k_x = jax.random.split(key)

    IMG = 16
    x = jax.random.normal(k_x, (2, IN_CHANS, IMG, IMG), jnp.float32)   # NCHW
    params = init_params(k_params, IMG)
    prep = prepare_params(params)

    fwd = jax.jit(dinov2_backbone_forward)
    out = jax.block_until_ready(fwd(prep, x))

    expected_hw = IMG // PATCH
    assert out.shape == (2, EMBED_DIM, expected_hw, expected_hw), out.shape
    assert out.dtype == jnp.float32
    assert bool(jnp.all(jnp.isfinite(out)))

    # Kernel uses bf16 matmuls (f32 accumulation); reference is pure f32, so the
    # tolerance is looser than the previous all-f32 version (precision, not a bug).
    ref = reference_forward(params, x)
    max_err = float(jnp.max(jnp.abs(out - ref)))
    assert max_err < 2e-2, f"max abs err vs f32 reference: {max_err}"
    print("KERNEL_OK")
</pallas_src>

<mosaic_0001>
module attributes {stable_mosaic.version = 11 : i64} {
  func.func @_vit_kernel(%arg0: i32, %arg1: i32, %arg2: memref<1x16x48xbf16, #tpu.memory_space<vmem>>, %arg3: memref<48x32xbf16, #tpu.memory_space<vmem>>, %arg4: memref<17x32xf32, #tpu.memory_space<vmem>>, %arg5: memref<1x32x96xbf16, #tpu.memory_space<vmem>>, %arg6: memref<1x1x96xf32, #tpu.memory_space<vmem>>, %arg7: memref<1x32x32xbf16, #tpu.memory_space<vmem>>, %arg8: memref<1x1x32xf32, #tpu.memory_space<vmem>>, %arg9: memref<1x1x32xf32, #tpu.memory_space<vmem>>, %arg10: memref<1x1x32xf32, #tpu.memory_space<vmem>>, %arg11: memref<1x1x32xf32, #tpu.memory_space<vmem>>, %arg12: memref<1x1x32xf32, #tpu.memory_space<vmem>>, %arg13: memref<1x1x32xf32, #tpu.memory_space<vmem>>, %arg14: memref<1x32x128xbf16, #tpu.memory_space<vmem>>, %arg15: memref<1x1x128xf32, #tpu.memory_space<vmem>>, %arg16: memref<1x128x32xbf16, #tpu.memory_space<vmem>>, %arg17: memref<1x1x32xf32, #tpu.memory_space<vmem>>, %arg18: memref<1x1x32xf32, #tpu.memory_space<vmem>>, %arg19: memref<1x32xf32, #tpu.memory_space<vmem>>, %arg20: memref<1x32xf32, #tpu.memory_space<vmem>>, %arg21: memref<1x16x32xf32, #tpu.memory_space<vmem>>, %arg22: memref<17x32xf32, #tpu.memory_space<vmem>>) attributes {dimension_semantics = [#tpu.dimension_semantics<parallel>, #tpu.dimension_semantics<arbitrary>], iteration_bounds = array<i64: 2, 2>, scalar_prefetch = 0 : i64, scratch_operands = 1 : i64, tpu.core_type = #tpu.core_type<tc>, window_params = [{transform_indices = @transform_0, window_bounds = array<i64: 1, 16, 48>}, {pipeline_mode = #tpu.pipeline_mode<synchronous>, transform_indices = @transform_1, window_bounds = array<i64: 48, 32>}, {pipeline_mode = #tpu.pipeline_mode<synchronous>, transform_indices = @transform_2, window_bounds = array<i64: 17, 32>}, {transform_indices = @transform_3, window_bounds = array<i64: 1, 32, 96>}, {transform_indices = @transform_4, window_bounds = array<i64: 1, 1, 96>}, {transform_indices = @transform_5, window_bounds = array<i64: 1, 32, 32>}, {transform_indices = @transform_6, window_bounds = array<i64: 1, 1, 32>}, {transform_indices = @transform_7, window_bounds = array<i64: 1, 1, 32>}, {transform_indices = @transform_8, window_bounds = array<i64: 1, 1, 32>}, {transform_indices = @transform_9, window_bounds = array<i64: 1, 1, 32>}, {transform_indices = @transform_10, window_bounds = array<i64: 1, 1, 32>}, {transform_indices = @transform_11, window_bounds = array<i64: 1, 1, 32>}, {transform_indices = @transform_12, window_bounds = array<i64: 1, 32, 128>}, {transform_indices = @transform_13, window_bounds = array<i64: 1, 1, 128>}, {transform_indices = @transform_14, window_bounds = array<i64: 1, 128, 32>}, {transform_indices = @transform_15, window_bounds = array<i64: 1, 1, 32>}, {transform_indices = @transform_16, window_bounds = array<i64: 1, 1, 32>}, {pipeline_mode = #tpu.pipeline_mode<synchronous>, transform_indices = @transform_17, window_bounds = array<i64: 1, 32>}, {pipeline_mode = #tpu.pipeline_mode<synchronous>, transform_indices = @transform_18, window_bounds = array<i64: 1, 32>}, {transform_indices = @transform_19, window_bounds = array<i64: 1, 16, 32>}]} {
    %c0_i32 = arith.constant 0 : i32
    %0 = arith.cmpi eq, %arg1, %c0_i32 : i32
    %1 = arith.extui %0 : i1 to i32
    %c0_i32_0 = arith.constant 0 : i32
    %2 = arith.cmpi ne, %1, %c0_i32_0 : i32
    scf.if %2 {
      %c0_80 = arith.constant 0 : index
      %c0_81 = arith.constant 0 : index
      %c0_82 = arith.constant 0 : index
      %175 = vector.load %arg2[%c0_80, %c0_81, %c0_82] : memref<1x16x48xbf16, #tpu.memory_space<vmem>>, vector<1x16x48xbf16>
      %176 = vector.shape_cast %175 : vector<1x16x48xbf16> to vector<16x48xbf16>
      %c0_83 = arith.constant 0 : index
      %c0_84 = arith.constant 0 : index
      %177 = vector.load %arg3[%c0_83, %c0_84] : memref<48x32xbf16, #tpu.memory_space<vmem>>, vector<48x32xbf16>
      %cst_85 = arith.constant dense<0.000000e+00> : vector<16x32xf32>
      %178 = tpu.matmul %176, %177, %cst_85 {dimension_numbers = #tpu.dot_dimension_numbers<[1], [0], [0], [1], [0, 0, 1, 1], [], []>} : vector<16x48xbf16>, vector<48x32xbf16>, vector<16x32xf32> -> vector<16x32xf32>
      %cst_86 = arith.constant 0.000000e+00 : f32
      %179 = vector.broadcast %cst_86 : f32 to vector<1x32xf32>
      %180 = tpu.concatenate %179, %178 in 0 : vector<1x32xf32>, vector<16x32xf32> -> vector<17x32xf32>
      %c0_87 = arith.constant 0 : index
      %c0_88 = arith.constant 0 : index
      %181 = vector.load %arg4[%c0_87, %c0_88] : memref<17x32xf32, #tpu.memory_space<vmem>>, vector<17x32xf32>
      %182 = arith.addf %180, %181 : vector<17x32xf32>
      %c0_89 = arith.constant 0 : index
      %c0_90 = arith.constant 0 : index
      %183 = vector.load %arg22[%c0_89, %c0_90] : memref<17x32xf32, #tpu.memory_space<vmem>>, vector<17x32xf32>
      tpu.vector_store %arg22[%c0_89, %c0_90], %182 {strides = array<i32>} : memref<17x32xf32, #tpu.memory_space<vmem>>, vector<17x32xf32>,
    } else {
    }
    %c0 = arith.constant 0 : index
    %c0_1 = arith.constant 0 : index
    %3 = vector.load %arg22[%c0, %c0_1] : memref<17x32xf32, #tpu.memory_space<vmem>>, vector<17x32xf32>
    %c0_2 = arith.constant 0 : index
    %c0_3 = arith.constant 0 : index
    %c0_4 = arith.constant 0 : index
    %4 = vector.load %arg10[%c0_2, %c0_3, %c0_4] : memref<1x1x32xf32, #tpu.memory_space<vmem>>, vector<1x1x32xf32>
    %5 = vector.shape_cast %4 : vector<1x1x32xf32> to vector<1x32xf32>
    %c0_5 = arith.constant 0 : index
    %c0_6 = arith.constant 0 : index
    %c0_7 = arith.constant 0 : index
    %6 = vector.load %arg11[%c0_5, %c0_6, %c0_7] : memref<1x1x32xf32, #tpu.memory_space<vmem>>, vector<1x1x32xf32>
    %7 = vector.shape_cast %6 : vector<1x1x32xf32> to vector<1x32xf32>
    %cst = arith.constant dense<0.000000e+00> : vector<17xf32>
    %8 = vector.multi_reduction <add>, %3, %cst [1] : vector<17x32xf32> to vector<17xf32>
    %9 = vector.shape_cast %8 : vector<17xf32> to vector<17x1xf32>
    %cst_8 = arith.constant 3.200000e+01 : f32
    %10 = vector.broadcast %cst_8 : f32 to vector<17x1xf32>
    %11 = arith.divf %9, %10 : vector<17x1xf32>
    %12 = vector.broadcast %11 : vector<17x1xf32> to vector<17x32xf32>
    %13 = arith.subf %3, %12 : vector<17x32xf32>
    %14 = arith.mulf %13, %13 : vector<17x32xf32>
    %cst_9 = arith.constant dense<0.000000e+00> : vector<17xf32>
    %15 = vector.multi_reduction <add>, %14, %cst_9 [1] : vector<17x32xf32> to vector<17xf32>
    %16 = vector.shape_cast %15 : vector<17xf32> to vector<17x1xf32>
    %cst_10 = arith.constant 3.200000e+01 : f32
    %17 = vector.broadcast %cst_10 : f32 to vector<17x1xf32>
    %18 = arith.divf %16, %17 : vector<17x1xf32>
    %cst_11 = arith.constant 9.99999997E-7 : f32
    %19 = vector.broadcast %cst_11 : f32 to vector<17x1xf32>
    %20 = arith.addf %18, %19 : vector<17x1xf32>
    %21 = math.rsqrt %20 : vector<17x1xf32>
    %22 = vector.broadcast %21 : vector<17x1xf32> to vector<17x32xf32>
    %23 = arith.mulf %13, %22 : vector<17x32xf32>
    %24 = vector.broadcast %5 : vector<1x32xf32> to vector<17x32xf32>
    %25 = arith.mulf %23, %24 : vector<17x32xf32>
    %26 = vector.broadcast %7 : vector<1x32xf32> to vector<17x32xf32>
    %27 = arith.addf %25, %26 : vector<17x32xf32>
    %c0_12 = arith.constant 0 : index
    %c0_13 = arith.constant 0 : index
    %c0_14 = arith.constant 0 : index
    %28 = vector.load %arg5[%c0_12, %c0_13, %c0_14] : memref<1x32x96xbf16, #tpu.memory_space<vmem>>, vector<1x32x96xbf16>
    %29 = vector.shape_cast %28 : vector<1x32x96xbf16> to vector<32x96xbf16>
    %30 = arith.truncf %27 : vector<17x32xf32> to vector<17x32xbf16>
    %cst_15 = arith.constant dense<0.000000e+00> : vector<17x96xf32>
    %31 = tpu.matmul %30, %29, %cst_15 {dimension_numbers = #tpu.dot_dimension_numbers<[1], [0], [0], [1], [0, 0, 1, 1], [], []>} : vector<17x32xbf16>, vector<32x96xbf16>, vector<17x96xf32> -> vector<17x96xf32>
    %c0_16 = arith.constant 0 : index
    %c0_17 = arith.constant 0 : index
    %c0_18 = arith.constant 0 : index
    %32 = vector.load %arg6[%c0_16, %c0_17, %c0_18] : memref<1x1x96xf32, #tpu.memory_space<vmem>>, vector<1x1x96xf32>
    %33 = vector.shape_cast %32 : vector<1x1x96xf32> to vector<1x96xf32>
    %34 = vector.broadcast %33 : vector<1x96xf32> to vector<17x96xf32>
    %35 = arith.addf %31, %34 : vector<17x96xf32>
    %36 = vector.extract_strided_slice %35 {offsets = [0, 0], sizes = [17, 32], strides = [1, 1]} : vector<17x96xf32> to vector<17x32xf32>
    %cst_19 = arith.constant 0.353553385 : f32
    %37 = vector.broadcast %cst_19 : f32 to vector<17x32xf32>
    %38 = arith.mulf %36, %37 : vector<17x32xf32>
    %39 = arith.truncf %38 : vector<17x32xf32> to vector<17x32xbf16>
    %40 = vector.extract_strided_slice %35 {offsets = [0, 32], sizes = [17, 32], strides = [1, 1]} : vector<17x96xf32> to vector<17x32xf32>
    %41 = arith.truncf %40 : vector<17x32xf32> to vector<17x32xbf16>
    %42 = vector.extract_strided_slice %35 {offsets = [0, 64], sizes = [17, 32], strides = [1, 1]} : vector<17x96xf32> to vector<17x32xf32>
    %43 = arith.truncf %42 : vector<17x32xf32> to vector<17x32xbf16>
    %44 = vector.extract_strided_slice %39 {offsets = [0, 0], sizes = [17, 8], strides = [1, 1]} : vector<17x32xbf16> to vector<17x8xbf16>
    %45 = vector.extract_strided_slice %41 {offsets = [0, 0], sizes = [17, 8], strides = [1, 1]} : vector<17x32xbf16> to vector<17x8xbf16>
    %cst_20 = arith.constant dense<0.000000e+00> : vector<17x17xf32>
    %46 = tpu.matmul %44, %45, %cst_20 {dimension_numbers = #tpu.dot_dimension_numbers<[1], [1], [0], [0], [0, 0, 1, 0], [], []>} : vector<17x8xbf16>, vector<17x8xbf16>, vector<17x17xf32> -> vector<17x17xf32>
    %cst_21 = arith.constant dense<0xFF800000> : vector<17xf32>
    %47 = vector.multi_reduction <maximumf>, %46, %cst_21 [1] : vector<17x17xf32> to vector<17xf32>
    %48 = vector.shape_cast %47 : vector<17xf32> to vector<17x1xf32>
    %49 = vector.broadcast %48 : vector<17x1xf32> to vector<17x17xf32>
    %50 = arith.subf %46, %49 : vector<17x17xf32>
    %51 = math.exp %50 : vector<17x17xf32>
    %cst_22 = arith.constant dense<0.000000e+00> : vector<17xf32>
    %52 = vector.multi_reduction <add>, %51, %cst_22 [1] : vector<17x17xf32> to vector<17xf32>
    %53 = vector.shape_cast %52 : vector<17xf32> to vector<17x1xf32>
    %54 = vector.broadcast %53 : vector<17x1xf32> to vector<17x17xf32>
    %55 = arith.divf %51, %54 : vector<17x17xf32>
    %56 = vector.extract_strided_slice %43 {offsets = [0, 0], sizes = [17, 8], strides = [1, 1]} : vector<17x32xbf16> to vector<17x8xbf16>
    %57 = arith.truncf %55 : vector<17x17xf32> to vector<17x17xbf16>
    %cst_23 = arith.constant dense<0.000000e+00> : vector<17x8xf32>
    %58 = tpu.matmul %57, %56, %cst_23 {dimension_numbers = #tpu.dot_dimension_numbers<[1], [0], [0], [1], [0, 0, 1, 1], [], []>} : vector<17x17xbf16>, vector<17x8xbf16>, vector<17x8xf32> -> vector<17x8xf32>
    %59 = vector.extract_strided_slice %39 {offsets = [0, 8], sizes = [17, 8], strides = [1, 1]} : vector<17x32xbf16> to vector<17x8xbf16>
    %60 = vector.extract_strided_slice %41 {offsets = [0, 8], sizes = [17, 8], strides = [1, 1]} : vector<17x32xbf16> to vector<17x8xbf16>
    %cst_24 = arith.constant dense<0.000000e+00> : vector<17x17xf32>
    %61 = tpu.matmul %59, %60, %cst_24 {dimension_numbers = #tpu.dot_dimension_numbers<[1], [1], [0], [0], [0, 0, 1, 0], [], []>} : vector<17x8xbf16>, vector<17x8xbf16>, vector<17x17xf32> -> vector<17x17xf32>
    %cst_25 = arith.constant dense<0xFF800000> : vector<17xf32>
    %62 = vector.multi_reduction <maximumf>, %61, %cst_25 [1] : vector<17x17xf32> to vector<17xf32>
    %63 = vector.shape_cast %62 : vector<17xf32> to vector<17x1xf32>
    %64 = vector.broadcast %63 : vector<17x1xf32> to vector<17x17xf32>
    %65 = arith.subf %61, %64 : vector<17x17xf32>
    %66 = math.exp %65 : vector<17x17xf32>
    %cst_26 = arith.constant dense<0.000000e+00> : vector<17xf32>
    %67 = vector.multi_reduction <add>, %66, %cst_26 [1] : vector<17x17xf32> to vector<17xf32>
    %68 = vector.shape_cast %67 : vector<17xf32> to vector<17x1xf32>
    %69 = vector.broadcast %68 : vector<17x1xf32> to vector<17x17xf32>
    %70 = arith.divf %66, %69 : vector<17x17xf32>
    %71 = vector.extract_strided_slice %43 {offsets = [0, 8], sizes = [17, 8], strides = [1, 1]} : vector<17x32xbf16> to vector<17x8xbf16>
    %72 = arith.truncf %70 : vector<17x17xf32> to vector<17x17xbf16>
    %cst_27 = arith.constant dense<0.000000e+00> : vector<17x8xf32>
    %73 = tpu.matmul %72, %71, %cst_27 {dimension_numbers = #tpu.dot_dimension_numbers<[1], [0], [0], [1], [0, 0, 1, 1], [], []>} : vector<17x17xbf16>, vector<17x8xbf16>, vector<17x8xf32> -> vector<17x8xf32>
    %74 = vector.extract_strided_slice %39 {offsets = [0, 16], sizes = [17, 8], strides = [1, 1]} : vector<17x32xbf16> to vector<17x8xbf16>
    %75 = vector.extract_strided_slice %41 {offsets = [0, 16], sizes = [17, 8], strides = [1, 1]} : vector<17x32xbf16> to vector<17x8xbf16>
    %cst_28 = arith.constant dense<0.000000e+00> : vector<17x17xf32>
    %76 = tpu.matmul %74, %75, %cst_28 {dimension_numbers = #tpu.dot_dimension_numbers<[1], [1], [0], [0], [0, 0, 1, 0], [], []>} : vector<17x8xbf16>, vector<17x8xbf16>, vector<17x17xf32> -> vector<17x17xf32>
    %cst_29 = arith.constant dense<0xFF800000> : vector<17xf32>
    %77 = vector.multi_reduction <maximumf>, %76, %cst_29 [1] : vector<17x17xf32> to vector<17xf32>
    %78 = vector.shape_cast %77 : vector<17xf32> to vector<17x1xf32>
    %79 = vector.broadcast %78 : vector<17x1xf32> to vector<17x17xf32>
    %80 = arith.subf %76, %79 : vector<17x17xf32>
    %81 = math.exp %80 : vector<17x17xf32>
    %cst_30 = arith.constant dense<0.000000e+00> : vector<17xf32>
    %82 = vector.multi_reduction <add>, %81, %cst_30 [1] : vector<17x17xf32> to vector<17xf32>
    %83 = vector.shape_cast %82 : vector<17xf32> to vector<17x1xf32>
    %84 = vector.broadcast %83 : vector<17x1xf32> to vector<17x17xf32>
    %85 = arith.divf %81, %84 : vector<17x17xf32>
    %86 = vector.extract_strided_slice %43 {offsets = [0, 16], sizes = [17, 8], strides = [1, 1]} : vector<17x32xbf16> to vector<17x8xbf16>
    %87 = arith.truncf %85 : vector<17x17xf32> to vector<17x17xbf16>
    %cst_31 = arith.constant dense<0.000000e+00> : vector<17x8xf32>
    %88 = tpu.matmul %87, %86, %cst_31 {dimension_numbers = #tpu.dot_dimension_numbers<[1], [0], [0], [1], [0, 0, 1, 1], [], []>} : vector<17x17xbf16>, vector<17x8xbf16>, vector<17x8xf32> -> vector<17x8xf32>
    %89 = vector.extract_strided_slice %39 {offsets = [0, 24], sizes = [17, 8], strides = [1, 1]} : vector<17x32xbf16> to vector<17x8xbf16>
    %90 = vector.extract_strided_slice %41 {offsets = [0, 24], sizes = [17, 8], strides = [1, 1]} : vector<17x32xbf16> to vector<17x8xbf16>
    %cst_32 = arith.constant dense<0.000000e+00> : vector<17x17xf32>
    %91 = tpu.matmul %89, %90, %cst_32 {dimension_numbers = #tpu.dot_dimension_numbers<[1], [1], [0], [0], [0, 0, 1, 0], [], []>} : vector<17x8xbf16>, vector<17x8xbf16>, vector<17x17xf32> -> vector<17x17xf32>
    %cst_33 = arith.constant dense<0xFF800000> : vector<17xf32>
    %92 = vector.multi_reduction <maximumf>, %91, %cst_33 [1] : vector<17x17xf32> to vector<17xf32>
    %93 = vector.shape_cast %92 : vector<17xf32> to vector<17x1xf32>
    %94 = vector.broadcast %93 : vector<17x1xf32> to vector<17x17xf32>
    %95 = arith.subf %91, %94 : vector<17x17xf32>
    %96 = math.exp %95 : vector<17x17xf32>
    %cst_34 = arith.constant dense<0.000000e+00> : vector<17xf32>
    %97 = vector.multi_reduction <add>, %96, %cst_34 [1] : vector<17x17xf32> to vector<17xf32>
    %98 = vector.shape_cast %97 : vector<17xf32> to vector<17x1xf32>
    %99 = vector.broadcast %98 : vector<17x1xf32> to vector<17x17xf32>
    %100 = arith.divf %96, %99 : vector<17x17xf32>
    %101 = vector.extract_strided_slice %43 {offsets = [0, 24], sizes = [17, 8], strides = [1, 1]} : vector<17x32xbf16> to vector<17x8xbf16>
    %102 = arith.truncf %100 : vector<17x17xf32> to vector<17x17xbf16>
    %cst_35 = arith.constant dense<0.000000e+00> : vector<17x8xf32>
    %103 = tpu.matmul %102, %101, %cst_35 {dimension_numbers = #tpu.dot_dimension_numbers<[1], [0], [0], [1], [0, 0, 1, 1], [], []>} : vector<17x17xbf16>, vector<17x8xbf16>, vector<17x8xf32> -> vector<17x8xf32>
    %104 = tpu.concatenate %58, %73, %88, %103 in 1 : vector<17x8xf32>, vector<17x8xf32>, vector<17x8xf32>, vector<17x8xf32> -> vector<17x32xf32>
    %c0_36 = arith.constant 0 : index
    %c0_37 = arith.constant 0 : index
    %c0_38 = arith.constant 0 : index
    %105 = vector.load %arg7[%c0_36, %c0_37, %c0_38] : memref<1x32x32xbf16, #tpu.memory_space<vmem>>, vector<1x32x32xbf16>
    %106 = vector.shape_cast %105 : vector<1x32x32xbf16> to vector<32x32xbf16>
    %107 = arith.truncf %104 : vector<17x32xf32> to vector<17x32xbf16>
    %cst_39 = arith.constant dense<0.000000e+00> : vector<17x32xf32>
    %108 = tpu.matmul %107, %106, %cst_39 {dimension_numbers = #tpu.dot_dimension_numbers<[1], [0], [0], [1], [0, 0, 1, 1], [], []>} : vector<17x32xbf16>, vector<32x32xbf16>, vector<17x32xf32> -> vector<17x32xf32>
    %c0_40 = arith.constant 0 : index
    %c0_41 = arith.constant 0 : index
    %c0_42 = arith.constant 0 : index
    %109 = vector.load %arg8[%c0_40, %c0_41, %c0_42] : memref<1x1x32xf32, #tpu.memory_space<vmem>>, vector<1x1x32xf32>
    %110 = vector.shape_cast %109 : vector<1x1x32xf32> to vector<1x32xf32>
    %111 = vector.broadcast %110 : vector<1x32xf32> to vector<17x32xf32>
    %112 = arith.addf %108, %111 : vector<17x32xf32>
    %c0_43 = arith.constant 0 : index
    %c0_44 = arith.constant 0 : index
    %c0_45 = arith.constant 0 : index
    %113 = vector.load %arg9[%c0_43, %c0_44, %c0_45] : memref<1x1x32xf32, #tpu.memory_space<vmem>>, vector<1x1x32xf32>
    %114 = vector.shape_cast %113 : vector<1x1x32xf32> to vector<1x32xf32>
    %115 = vector.broadcast %114 : vector<1x32xf32> to vector<17x32xf32>
    %116 = arith.mulf %112, %115 : vector<17x32xf32>
    %117 = arith.addf %3, %116 : vector<17x32xf32>
    %c0_46 = arith.constant 0 : index
    %c0_47 = arith.constant 0 : index
    %c0_48 = arith.constant 0 : index
    %118 = vector.load %arg12[%c0_46, %c0_47, %c0_48] : memref<1x1x32xf32, #tpu.memory_space<vmem>>, vector<1x1x32xf32>
    %119 = vector.shape_cast %118 : vector<1x1x32xf32> to vector<1x32xf32>
    %c0_49 = arith.constant 0 : index
    %c0_50 = arith.constant 0 : index
    %c0_51 = arith.constant 0 : index
    %120 = vector.load %arg13[%c0_49, %c0_50, %c0_51] : memref<1x1x32xf32, #tpu.memory_space<vmem>>, vector<1x1x32xf32>
    %121 = vector.shape_cast %120 : vector<1x1x32xf32> to vector<1x32xf32>
    %cst_52 = arith.constant dense<0.000000e+00> : vector<17xf32>
    %122 = vector.multi_reduction <add>, %117, %cst_52 [1] : vector<17x32xf32> to vector<17xf32>
    %123 = vector.shape_cast %122 : vector<17xf32> to vector<17x1xf32>
    %cst_53 = arith.constant 3.200000e+01 : f32
    %124 = vector.broadcast %cst_53 : f32 to vector<17x1xf32>
    %125 = arith.divf %123, %124 : vector<17x1xf32>
    %126 = vector.broadcast %125 : vector<17x1xf32> to vector<17x32xf32>
    %127 = arith.subf %117, %126 : vector<17x32xf32>
    %128 = arith.mulf %127, %127 : vector<17x32xf32>
    %cst_54 = arith.constant dense<0.000000e+00> : vector<17xf32>
    %129 = vector.multi_reduction <add>, %128, %cst_54 [1] : vector<17x32xf32> to vector<17xf32>
    %130 = vector.shape_cast %129 : vector<17xf32> to vector<17x1xf32>
    %cst_55 = arith.constant 3.200000e+01 : f32
    %131 = vector.broadcast %cst_55 : f32 to vector<17x1xf32>
    %132 = arith.divf %130, %131 : vector<17x1xf32>
    %cst_56 = arith.constant 9.99999997E-7 : f32
    %133 = vector.broadcast %cst_56 : f32 to vector<17x1xf32>
    %134 = arith.addf %132, %133 : vector<17x1xf32>
    %135 = math.rsqrt %134 : vector<17x1xf32>
    %136 = vector.broadcast %135 : vector<17x1xf32> to vector<17x32xf32>
    %137 = arith.mulf %127, %136 : vector<17x32xf32>
    %138 = vector.broadcast %119 : vector<1x32xf32> to vector<17x32xf32>
    %139 = arith.mulf %137, %138 : vector<17x32xf32>
    %140 = vector.broadcast %121 : vector<1x32xf32> to vector<17x32xf32>
    %141 = arith.addf %139, %140 : vector<17x32xf32>
    %c0_57 = arith.constant 0 : index
    %c0_58 = arith.constant 0 : index
    %c0_59 = arith.constant 0 : index
    %142 = vector.load %arg14[%c0_57, %c0_58, %c0_59] : memref<1x32x128xbf16, #tpu.memory_space<vmem>>, vector<1x32x128xbf16>
    %143 = vector.shape_cast %142 : vector<1x32x128xbf16> to vector<32x128xbf16>
    %144 = arith.truncf %141 : vector<17x32xf32> to vector<17x32xbf16>
    %cst_60 = arith.constant dense<0.000000e+00> : vector<17x128xf32>
    %145 = tpu.matmul %144, %143, %cst_60 {dimension_numbers = #tpu.dot_dimension_numbers<[1], [0], [0], [1], [0, 0, 1, 1], [], []>} : vector<17x32xbf16>, vector<32x128xbf16>, vector<17x128xf32> -> vector<17x128xf32>
    %c0_61 = arith.constant 0 : index
    %c0_62 = arith.constant 0 : index
    %c0_63 = arith.constant 0 : index
    %146 = vector.load %arg15[%c0_61, %c0_62, %c0_63] : memref<1x1x128xf32, #tpu.memory_space<vmem>>, vector<1x1x128xf32>
    %147 = vector.shape_cast %146 : vector<1x1x128xf32> to vector<1x128xf32>
    %148 = vector.broadcast %147 : vector<1x128xf32> to vector<17x128xf32>
    %149 = arith.addf %145, %148 : vector<17x128xf32>
    %cst_64 = arith.constant 5.000000e-01 : f32
    %150 = vector.broadcast %cst_64 : f32 to vector<17x128xf32>
    %151 = arith.mulf %150, %149 : vector<17x128xf32>
    %cst_65 = arith.constant 0.707106769 : f32
    %152 = vector.broadcast %cst_65 : f32 to vector<17x128xf32>
    %153 = arith.mulf %149, %152 : vector<17x128xf32>
    %154 = math.erf %153 : vector<17x128xf32>
    %cst_66 = arith.constant 1.000000e+00 : f32
    %155 = vector.broadcast %cst_66 : f32 to vector<17x128xf32>
    %156 = arith.addf %155, %154 : vector<17x128xf32>
    %157 = arith.mulf %151, %156 : vector<17x128xf32>
    %c0_67 = arith.constant 0 : index
    %c0_68 = arith.constant 0 : index
    %c0_69 = arith.constant 0 : index
    %158 = vector.load %arg16[%c0_67, %c0_68, %c0_69] : memref<1x128x32xbf16, #tpu.memory_space<vmem>>, vector<1x128x32xbf16>
    %159 = vector.shape_cast %158 : vector<1x128x32xbf16> to vector<128x32xbf16>
    %160 = arith.truncf %157 : vector<17x128xf32> to vector<17x128xbf16>
    %cst_70 = arith.constant dense<0.000000e+00> : vector<17x32xf32>
    %161 = tpu.matmul %160, %159, %cst_70 {dimension_numbers = #tpu.dot_dimension_numbers<[1], [0], [0], [1], [0, 0, 1, 1], [], []>} : vector<17x128xbf16>, vector<128x32xbf16>, vector<17x32xf32> -> vector<17x32xf32>
    %c0_71 = arith.constant 0 : index
    %c0_72 = arith.constant 0 : index
    %c0_73 = arith.constant 0 : index
    %162 = vector.load %arg17[%c0_71, %c0_72, %c0_73] : memref<1x1x32xf32, #tpu.memory_space<vmem>>, vector<1x1x32xf32>
    %163 = vector.shape_cast %162 : vector<1x1x32xf32> to vector<1x32xf32>
    %164 = vector.broadcast %163 : vector<1x32xf32> to vector<17x32xf32>
    %165 = arith.addf %161, %164 : vector<17x32xf32>
    %c0_74 = arith.constant 0 : index
    %c0_75 = arith.constant 0 : index
    %c0_76 = arith.constant 0 : index
    %166 = vector.load %arg18[%c0_74, %c0_75, %c0_76] : memref<1x1x32xf32, #tpu.memory_space<vmem>>, vector<1x1x32xf32>
    %167 = vector.shape_cast %166 : vector<1x1x32xf32> to vector<1x32xf32>
    %168 = vector.broadcast %167 : vector<1x32xf32> to vector<17x32xf32>
    %169 = arith.mulf %165, %168 : vector<17x32xf32>
    %170 = arith.addf %117, %169 : vector<17x32xf32>
    %c0_77 = arith.constant 0 : index
    %c0_78 = arith.constant 0 : index
    %171 = vector.load %arg22[%c0_77, %c0_78] : memref<17x32xf32, #tpu.memory_space<vmem>>, vector<17x32xf32>
    tpu.vector_store %arg22[%c0_77, %c0_78], %170 {strides = array<i32>} : memref<17x32xf32, #tpu.memory_space<vmem>>, vector<17x32xf32>,
    %c1_i32 = arith.constant 1 : i32
    %172 = arith.cmpi eq, %arg1, %c1_i32 : i32
    %173 = arith.extui %172 : i1 to i32
    %c0_i32_79 = arith.constant 0 : i32
    %174 = arith.cmpi ne, %173, %c0_i32_79 : i32
    scf.if %174 {
      %c0_80 = arith.constant 0 : index
      %c0_81 = arith.constant 0 : index
      %175 = vector.load %arg19[%c0_80, %c0_81] : memref<1x32xf32, #tpu.memory_space<vmem>>, vector<1x32xf32>
      %c0_82 = arith.constant 0 : index
      %c0_83 = arith.constant 0 : index
      %176 = vector.load %arg20[%c0_82, %c0_83] : memref<1x32xf32, #tpu.memory_space<vmem>>, vector<1x32xf32>
      %cst_84 = arith.constant dense<0.000000e+00> : vector<17xf32>
      %177 = vector.multi_reduction <add>, %170, %cst_84 [1] : vector<17x32xf32> to vector<17xf32>
      %178 = vector.shape_cast %177 : vector<17xf32> to vector<17x1xf32>
      %cst_85 = arith.constant 3.200000e+01 : f32
      %179 = vector.broadcast %cst_85 : f32 to vector<17x1xf32>
      %180 = arith.divf %178, %179 : vector<17x1xf32>
      %181 = vector.broadcast %180 : vector<17x1xf32> to vector<17x32xf32>
      %182 = arith.subf %170, %181 : vector<17x32xf32>
      %183 = arith.mulf %182, %182 : vector<17x32xf32>
      %cst_86 = arith.constant dense<0.000000e+00> : vector<17xf32>
      %184 = vector.multi_reduction <add>, %183, %cst_86 [1] : vector<17x32xf32> to vector<17xf32>
      %185 = vector.shape_cast %184 : vector<17xf32> to vector<17x1xf32>
      %cst_87 = arith.constant 3.200000e+01 : f32
      %186 = vector.broadcast %cst_87 : f32 to vector<17x1xf32>
      %187 = arith.divf %185, %186 : vector<17x1xf32>
      %cst_88 = arith.constant 9.99999997E-7 : f32
      %188 = vector.broadcast %cst_88 : f32 to vector<17x1xf32>
      %189 = arith.addf %187, %188 : vector<17x1xf32>
      %190 = math.rsqrt %189 : vector<17x1xf32>
      %191 = vector.broadcast %190 : vector<17x1xf32> to vector<17x32xf32>
      %192 = arith.mulf %182, %191 : vector<17x32xf32>
      %193 = vector.broadcast %175 : vector<1x32xf32> to vector<17x32xf32>
      %194 = arith.mulf %192, %193 : vector<17x32xf32>
      %195 = vector.broadcast %176 : vector<1x32xf32> to vector<17x32xf32>
      %196 = arith.addf %194, %195 : vector<17x32xf32>
      %197 = vector.extract_strided_slice %196 {offsets = [1, 0], sizes = [16, 32], strides = [1, 1]} : vector<17x32xf32> to vector<16x32xf32>
      %c0_89 = arith.constant 0 : index
      %c0_90 = arith.constant 0 : index
      %c0_91 = arith.constant 0 : index
      %198 = vector.load %arg21[%c0_89, %c0_90, %c0_91] : memref<1x16x32xf32, #tpu.memory_space<vmem>>, vector<1x16x32xf32>
      %199 = vector.shape_cast %198 : vector<1x16x32xf32> to vector<16x32xf32>
      %200 = vector.shape_cast %197 : vector<16x32xf32> to vector<1x16x32xf32>
      tpu.vector_store %arg21[%c0_89, %c0_90, %c0_91], %200 {strides = array<i32>} : memref<1x16x32xf32, #tpu.memory_space<vmem>>, vector<1x16x32xf32>,
    } else {
    }
    return
  }
  func.func @transform_0(%arg0: i32, %arg1: i32) -> (i32, i32, i32) {
    %c0_i32 = arith.constant 0 : i32
    %c0_i32_0 = arith.constant 0 : i32
    %c0_i32_1 = arith.constant 0 : i32
    return %arg0, %c0_i32, %c0_i32_0 : i32, i32, i32
  }
  func.func @transform_1(%arg0: i32, %arg1: i32) -> (i32, i32) {
    %c0_i32 = arith.constant 0 : i32
    %c0_i32_0 = arith.constant 0 : i32
    %c0_i32_1 = arith.constant 0 : i32
    return %c0_i32, %c0_i32_0 : i32, i32
  }
  func.func @transform_2(%arg0: i32, %arg1: i32) -> (i32, i32) {
    %c0_i32 = arith.constant 0 : i32
    %c0_i32_0 = arith.constant 0 : i32
    %c0_i32_1 = arith.constant 0 : i32
    return %c0_i32, %c0_i32_0 : i32, i32
  }
  func.func @transform_3(%arg0: i32, %arg1: i32) -> (i32, i32, i32) {
    %c0_i32 = arith.constant 0 : i32
    %c0_i32_0 = arith.constant 0 : i32
    %c0_i32_1 = arith.constant 0 : i32
    return %arg1, %c0_i32, %c0_i32_0 : i32, i32, i32
  }
  func.func @transform_4(%arg0: i32, %arg1: i32) -> (i32, i32, i32) {
    %c0_i32 = arith.constant 0 : i32
    %c0_i32_0 = arith.constant 0 : i32
    %c0_i32_1 = arith.constant 0 : i32
    return %arg1, %c0_i32, %c0_i32_0 : i32, i32, i32
  }
  func.func @transform_5(%arg0: i32, %arg1: i32) -> (i32, i32, i32) {
    %c0_i32 = arith.constant 0 : i32
    %c0_i32_0 = arith.constant 0 : i32
    %c0_i32_1 = arith.constant 0 : i32
    return %arg1, %c0_i32, %c0_i32_0 : i32, i32, i32
  }
  func.func @transform_6(%arg0: i32, %arg1: i32) -> (i32, i32, i32) {
    %c0_i32 = arith.constant 0 : i32
    %c0_i32_0 = arith.constant 0 : i32
    %c0_i32_1 = arith.constant 0 : i32
    return %arg1, %c0_i32, %c0_i32_0 : i32, i32, i32
  }
  func.func @transform_7(%arg0: i32, %arg1: i32) -> (i32, i32, i32) {
    %c0_i32 = arith.constant 0 : i32
    %c0_i32_0 = arith.constant 0 : i32
    %c0_i32_1 = arith.constant 0 : i32
    return %arg1, %c0_i32, %c0_i32_0 : i32, i32, i32
  }
  func.func @transform_8(%arg0: i32, %arg1: i32) -> (i32, i32, i32) {
    %c0_i32 = arith.constant 0 : i32
    %c0_i32_0 = arith.constant 0 : i32
    %c0_i32_1 = arith.constant 0 : i32
    return %arg1, %c0_i32, %c0_i32_0 : i32, i32, i32
  }
  func.func @transform_9(%arg0: i32, %arg1: i32) -> (i32, i32, i32) {
    %c0_i32 = arith.constant 0 : i32
    %c0_i32_0 = arith.constant 0 : i32
    %c0_i32_1 = arith.constant 0 : i32
    return %arg1, %c0_i32, %c0_i32_0 : i32, i32, i32
  }
  func.func @transform_10(%arg0: i32, %arg1: i32) -> (i32, i32, i32) {
    %c0_i32 = arith.constant 0 : i32
    %c0_i32_0 = arith.constant 0 : i32
    %c0_i32_1 = arith.constant 0 : i32
    return %arg1, %c0_i32, %c0_i32_0 : i32, i32, i32
  }
  func.func @transform_11(%arg0: i32, %arg1: i32) -> (i32, i32, i32) {
    %c0_i32 = arith.constant 0 : i32
    %c0_i32_0 = arith.constant 0 : i32
    %c0_i32_1 = arith.constant 0 : i32
    return %arg1, %c0_i32, %c0_i32_0 : i32, i32, i32
  }
  func.func @transform_12(%arg0: i32, %arg1: i32) -> (i32, i32, i32) {
    %c0_i32 = arith.constant 0 : i32
    %c0_i32_0 = arith.constant 0 : i32
    %c0_i32_1 = arith.constant 0 : i32
    return %arg1, %c0_i32, %c0_i32_0 : i32, i32, i32
  }
  func.func @transform_13(%arg0: i32, %arg1: i32) -> (i32, i32, i32) {
    %c0_i32 = arith.constant 0 : i32
    %c0_i32_0 = arith.constant 0 : i32
    %c0_i32_1 = arith.constant 0 : i32
    return %arg1, %c0_i32, %c0_i32_0 : i32, i32, i32
  }
  func.func @transform_14(%arg0: i32, %arg1: i32) -> (i32, i32, i32) {
    %c0_i32 = arith.constant 0 : i32
    %c0_i32_0 = arith.constant 0 : i32
    %c0_i32_1 = arith.constant 0 : i32
    return %arg1, %c0_i32, %c0_i32_0 : i32, i32, i32
  }
  func.func @transform_15(%arg0: i32, %arg1: i32) -> (i32, i32, i32) {
    %c0_i32 = arith.constant 0 : i32
    %c0_i32_0 = arith.constant 0 : i32
    %c0_i32_1 = arith.constant 0 : i32
    return %arg1, %c0_i32, %c0_i32_0 : i32, i32, i32
  }
  func.func @transform_16(%arg0: i32, %arg1: i32) -> (i32, i32, i32) {
    %c0_i32 = arith.constant 0 : i32
    %c0_i32_0 = arith.constant 0 : i32
    %c0_i32_1 = arith.constant 0 : i32
    return %arg1, %c0_i32, %c0_i32_0 : i32, i32, i32
  }
  func.func @transform_17(%arg0: i32, %arg1: i32) -> (i32, i32) {
    %c0_i32 = arith.constant 0 : i32
    %c0_i32_0 = arith.constant 0 : i32
    %c0_i32_1 = arith.constant 0 : i32
    return %c0_i32, %c0_i32_0 : i32, i32
  }
  func.func @transform_18(%arg0: i32, %arg1: i32) -> (i32, i32) {
    %c0_i32 = arith.constant 0 : i32
    %c0_i32_0 = arith.constant 0 : i32
    %c0_i32_1 = arith.constant 0 : i32
    return %c0_i32, %c0_i32_0 : i32, i32
  }
  func.func @transform_19(%arg0: i32, %arg1: i32) -> (i32, i32, i32) {
    %c0_i32 = arith.constant 0 : i32
    %c0_i32_0 = arith.constant 0 : i32
    %c0_i32_1 = arith.constant 0 : i32
    return %arg0, %c0_i32, %c0_i32_0 : i32, i32, i32
  }
}

</mosaic_0001>

<llo_original>
// kernel: dinov2_backbone_forward.1
$region0: #{dinov2_backbone_forward.1}
  #allocation0 [shape = 'u32[]', space=smem, size = 0x4, offset = 0x4, fixed_abs, tag = 'smem constant byte address 0x4 - core index']
  #allocation1 [shape = 'u32[144,128]{1,0:T(1,128)}', space=vmem, size = 0x12000, scoped, tag = 'internal scratch']
  #allocation2 [shape = 'f32[17,32]{1,0:T(8,128)}', space=vmem, size = 0x3000, scoped, tag = 'scratch operand']
  %s0 = inlined_call_operand.vmem [shape: bf16[2,16,48], index: 0, kind: input, shape index: {}]
  %s1 = inlined_call_operand.vmem [shape: bf16[48,32], index: 1, kind: input, shape index: {}]
  %s2 = inlined_call_operand.vmem [shape: f32[17,32], index: 2, kind: input, shape index: {}]
  %s3 = inlined_call_operand.vmem [shape: bf16[2,32,96], index: 3, kind: input, shape index: {}]
  %s4 = inlined_call_operand.vmem [shape: f32[2,1,96], index: 4, kind: input, shape index: {}]
  %s5 = inlined_call_operand.vmem [shape: bf16[2,32,32], index: 5, kind: input, shape index: {}]
  %s6 = inlined_call_operand.vmem [shape: f32[2,1,32], index: 6, kind: input, shape index: {}]
  %s7 = inlined_call_operand.vmem [shape: f32[2,1,32], index: 7, kind: input, shape index: {}]
  %s8 = inlined_call_operand.vmem [shape: f32[2,1,32], index: 8, kind: input, shape index: {}]
  %s9 = inlined_call_operand.vmem [shape: f32[2,1,32], index: 9, kind: input, shape index: {}]
  %s10 = inlined_call_operand.vmem [shape: f32[2,1,32], index: 10, kind: input, shape index: {}]
  %s11 = inlined_call_operand.vmem [shape: f32[2,1,32], index: 11, kind: input, shape index: {}]
  %s12 = inlined_call_operand.vmem [shape: bf16[2,32,128], index: 12, kind: input, shape index: {}]
  %s13 = inlined_call_operand.vmem [shape: f32[2,1,128], index: 13, kind: input, shape index: {}]
  %s14 = inlined_call_operand.vmem [shape: bf16[2,128,32], index: 14, kind: input, shape index: {}]
  %s15 = inlined_call_operand.vmem [shape: f32[2,1,32], index: 15, kind: input, shape index: {}]
  %s16 = inlined_call_operand.vmem [shape: f32[2,1,32], index: 16, kind: input, shape index: {}]
  %s17 = inlined_call_operand.vmem [shape: f32[1,32], index: 17, kind: input, shape index: {}]
  %s18 = inlined_call_operand.vmem [shape: f32[1,32], index: 18, kind: input, shape index: {}]
  %s19 = inlined_call_operand.hbm [shape: f32[2,16,32], index: 19, kind: output, shape index: {}]
  %s20 = sld [smem:[#allocation0]]
  $region117: #{dinov2_backbone_forward.1} parent=0
    _
  %s22 = ssub.s32 1, %s20
  %s23 = scalar_select 0, %s22, %s20
  $region1: #{dinov2_backbone_forward.1} parent=0
    #allocation3 [shape = 'u8[16384]{0}', space=vmem, size = 0x4000, scoped, tag = 'output window, operand 0']
    #allocation4 [shape = 's32[2]{0}', space=sflag, size = 0x8, scoped, tag = 'scoped memory for dinov2_backbone_forward.1']
    %24 = vsyncpa [#allocation4], 0
    %s25 = scalar_lea.sflag [#allocation4], 1
    %26 = vsyncpa %s25, 0
    loop: start=0, step=1, limit=6
    $region2: #{dinov2_backbone_forward.1} parent=1 // loop_pre_header
      _
    $region3: #{dinov2_backbone_forward.1} parent=1 // loop_header
      %s28 = sphi 0, %s32
      %p29 = scmp.ge.s32.totalorder %s28, 6
      %s35 = sphi 0, %s47
      %s36 = sphi 0, %s43
      %s37 = sphi 0, %s35
      %s38 = sphi 0, %s36
      %s39 = sphi 0, %s37
      %s40 = sphi 0, %s38
      %s50 = sphi 0, %s52
      %s53 = sphi 0, %s50
      %s54 = sphi 0, %s53
      %s70 = sphi 0, %s54
      %s74 = sphi 0, %s74
      %s76 = sphi 0, %s74
      %s77 = sphi 0, %s76
      %s91 = sphi 0, %s77
      %s95 = sphi 0, %s95
      %s97 = sphi 0, %s95
      %s98 = sphi 0, %s97
      %s112 = sphi 0, %s98
      %s118 = sphi 0, %s120
      %s121 = sphi 0, %s118
      %s122 = sphi 0, %s121
      %s138 = sphi 0, %s122
      %s144 = sphi 0, %s146
      %s147 = sphi 0, %s144
      %s148 = sphi 0, %s147
      %s164 = sphi 0, %s148
      %s170 = sphi 0, %s172
      %s173 = sphi 0, %s170
      %s174 = sphi 0, %s173
      %s190 = sphi 0, %s174
      %s196 = sphi 0, %s198
      %s199 = sphi 0, %s196
      %s200 = sphi 0, %s199
      %s216 = sphi 0, %s200
      %s222 = sphi 0, %s224
      %s225 = sphi 0, %s222
      %s226 = sphi 0, %s225
      %s242 = sphi 0, %s226
      %s248 = sphi 0, %s250
      %s251 = sphi 0, %s248
      %s252 = sphi 0, %s251
      %s268 = sphi 0, %s252
      %s274 = sphi 0, %s276
      %s277 = sphi 0, %s274
      %s278 = sphi 0, %s277
      %s294 = sphi 0, %s278
      %s300 = sphi 0, %s302
      %s303 = sphi 0, %s300
      %s304 = sphi 0, %s303
      %s320 = sphi 0, %s304
      %s326 = sphi 0, %s328
      %s329 = sphi 0, %s326
      %s330 = sphi 0, %s329
      %s346 = sphi 0, %s330
      %s352 = sphi 0, %s354
      %s355 = sphi 0, %s352
      %s356 = sphi 0, %s355
      %s372 = sphi 0, %s356
      %s378 = sphi 0, %s380
      %s381 = sphi 0, %s378
      %s382 = sphi 0, %s381
      %s398 = sphi 0, %s382
      %s404 = sphi 0, %s406
      %s407 = sphi 0, %s404
      %s408 = sphi 0, %s407
      %s424 = sphi 0, %s408
      %s430 = sphi 0, %s432
      %s433 = sphi 0, %s430
      %s434 = sphi 0, %s433
      %s450 = sphi 0, %s434
      %s456 = sphi 0, %s458
      %s459 = sphi 0, %s456
      %s460 = sphi 0, %s459
      %s476 = sphi 0, %s460
      %s480 = sphi 0, %s480
      %s482 = sphi 0, %s480
      %s483 = sphi 0, %s482
      %s497 = sphi 0, %s483
      %s501 = sphi 0, %s501
      %s503 = sphi 0, %s501
      %s504 = sphi 0, %s503
      %s518 = sphi 0, %s504
      %s524 = sphi 0, %s526
      %s527 = sphi 0, %s524
      %s528 = sphi 0, %s527
      %s544 = sphi 0, %s528
    $region4: #{dinov2_backbone_forward.1} parent=1 // loop_header_branch
      %31 = sbr.rel (%p29) target = $region8
    $region5: #{dinov2_backbone_forward.1} parent=1 // loop_body
      %s33 = ssub.s32 %s28, 1
      %s34 = ssub.s32 %s28, 2
      %s41 = sadd.s32 1, %s36
      %p42 = scmp.ge.s32.totalorder %s41, 2
      %s43 = scalar_select %p42, 0, %s41
      %s44 = sadd.s32 1, %s35
      %s45 = scalar_select %p42, %s44, %s35
      %p46 = scmp.ge.s32.totalorder %s45, 2
      %s47 = scalar_select %p46, 0, %s45
      %s48 = ssub.s32 %s35, %s47
      %p49 = scmp.eq.s32.totalorder %s48, 0
      %s51 = sadd.s32 %s50, 1
      %s52 = scalar_select %p49, %s50, %s51
      %p55 = pneg %p49
      %p56 = scmp.eq.s32.totalorder %s28, 3
      %p57 = por %p55, %p56
      %p58 = scmp.ne.s32.totalorder %s50, %s53
      %p59 = scmp.eq.s32.totalorder %s28, 0
      %p60 = por %p58, %p59
      %p61 = scmp.ne.s32.totalorder %s50, %s53
      %p62 = scmp.eq.s32.totalorder %s33, 3
      %p63 = por %p61, %p62
      %p64 = scmp.ne.s32.totalorder %s53, %s54
      %p65 = scmp.eq.s32.totalorder %s33, 0
      %p66 = por %p64, %p65
      %p67 = scmp.ne.s32.totalorder %s53, %s54
      %p68 = scmp.eq.s32.totalorder %s34, 3
      %p69 = por %p67, %p68
      %p71 = scmp.ne.s32.totalorder %s54, %s70
      %p72 = scmp.eq.s32.totalorder %s34, 0
      %p73 = por %p71, %p72
      %s75 = sadd.s32 %s74, 1
      %p78 = scmp.eq.s32.totalorder %s28, 3
      %p79 = scmp.ne.s32.totalorder %s74, %s76
      %p80 = scmp.eq.s32.totalorder %s28, 0
      %p81 = por %p79, %p80
      %p82 = scmp.ne.s32.totalorder %s74, %s76
      %p83 = scmp.eq.s32.totalorder %s33, 3
      %p84 = por %p82, %p83
      %p85 = scmp.ne.s32.totalorder %s76, %s77
      %p86 = scmp.eq.s32.totalorder %s33, 0
      %p87 = por %p85, %p86
      %p88 = scmp.ne.s32.totalorder %s76, %s77
      %p89 = scmp.eq.s32.totalorder %s34, 3
      %p90 = por %p88, %p89
      %p92 = scmp.ne.s32.totalorder %s77, %s91
      %p93 = scmp.eq.s32.totalorder %s34, 0
      %p94 = por %p92, %p93
      %s96 = sadd.s32 %s95, 1
      %p99 = scmp.eq.s32.totalorder %s28, 3
      %p100 = scmp.ne.s32.totalorder %s95, %s97
      %p101 = scmp.eq.s32.totalorder %s28, 0
      %p102 = por %p100, %p101
      %p103 = scmp.ne.s32.totalorder %s95, %s97
      %p104 = scmp.eq.s32.totalorder %s33, 3
      %p105 = por %p103, %p104
      %p106 = scmp.ne.s32.totalorder %s97, %s98
      %p107 = scmp.eq.s32.totalorder %s33, 0
      %p108 = por %p106, %p107
      %p109 = scmp.ne.s32.totalorder %s97, %s98
      %p110 = scmp.eq.s32.totalorder %s34, 3
      %p111 = por %p109, %p110
      %p113 = scmp.ne.s32.totalorder %s98, %s112
      %p114 = scmp.eq.s32.totalorder %s34, 0
      %p115 = por %p113, %p114
      %s116 = ssub.s32 %s36, %s43
      %p117 = scmp.eq.s32.totalorder %s116, 0
      %s119 = sadd.s32 %s118, 1
      %s120 = scalar_select %p117, %s118, %s119
      %p123 = pneg %p117
      %p124 = scmp.eq.s32.totalorder %s28, 3
      %p125 = por %p123, %p124
      %p126 = scmp.ne.s32.totalorder %s118, %s121
      %p127 = scmp.eq.s32.totalorder %s28, 0
      %p128 = por %p126, %p127
      %p129 = scmp.ne.s32.totalorder %s118, %s121
      %p130 = scmp.eq.s32.totalorder %s33, 3
      %p131 = por %p129, %p130
      %p132 = scmp.ne.s32.totalorder %s121, %s122
      %p133 = scmp.eq.s32.totalorder %s33, 0
      %p134 = por %p132, %p133
      %p135 = scmp.ne.s32.totalorder %s121, %s122
      %p136 = scmp.eq.s32.totalorder %s34, 3
      %p137 = por %p135, %p136
      %p139 = scmp.ne.s32.totalorder %s122, %s138
      %p140 = scmp.eq.s32.totalorder %s34, 0
      %p141 = por %p139, %p140
      %s142 = ssub.s32 %s36, %s43
      %p143 = scmp.eq.s32.totalorder %s142, 0
      %s145 = sadd.s32 %s144, 1
      %s146 = scalar_select %p143, %s144, %s145
      %p149 = pneg %p143
      %p150 = scmp.eq.s32.totalorder %s28, 3
      %p151 = por %p149, %p150
      %p152 = scmp.ne.s32.totalorder %s144, %s147
      %p153 = scmp.eq.s32.totalorder %s28, 0
      %p154 = por %p152, %p153
      %p155 = scmp.ne.s32.totalorder %s144, %s147
      %p156 = scmp.eq.s32.totalorder %s33, 3
      %p157 = por %p155, %p156
      %p158 = scmp.ne.s32.totalorder %s147, %s148
      %p159 = scmp.eq.s32.totalorder %s33, 0
      %p160 = por %p158, %p159
      %p161 = scmp.ne.s32.totalorder %s147, %s148
      %p162 = scmp.eq.s32.totalorder %s34, 3
      %p163 = por %p161, %p162
      %p165 = scmp.ne.s32.totalorder %s148, %s164
      %p166 = scmp.eq.s32.totalorder %s34, 0
      %p167 = por %p165, %p166
      %s168 = ssub.s32 %s36, %s43
      %p169 = scmp.eq.s32.totalorder %s168, 0
      %s171 = sadd.s32 %s170, 1
      %s172 = scalar_select %p169, %s170, %s171
      %p175 = pneg %p169
      %p176 = scmp.eq.s32.totalorder %s28, 3
      %p177 = por %p175, %p176
      %p178 = scmp.ne.s32.totalorder %s170, %s173
      %p179 = scmp.eq.s32.totalorder %s28, 0
      %p180 = por %p178, %p179
      %p181 = scmp.ne.s32.totalorder %s170, %s173
      %p182 = scmp.eq.s32.totalorder %s33, 3
      %p183 = por %p181, %p182
      %p184 = scmp.ne.s32.totalorder %s173, %s174
      %p185 = scmp.eq.s32.totalorder %s33, 0
      %p186 = por %p184, %p185
      %p187 = scmp.ne.s32.totalorder %s173, %s174
      %p188 = scmp.eq.s32.totalorder %s34, 3
      %p189 = por %p187, %p188
      %p191 = scmp.ne.s32.totalorder %s174, %s190
      %p192 = scmp.eq.s32.totalorder %s34, 0
      %p193 = por %p191, %p192
      %s194 = ssub.s32 %s36, %s43
      %p195 = scmp.eq.s32.totalorder %s194, 0
      %s197 = sadd.s32 %s196, 1
      %s198 = scalar_select %p195, %s196, %s197
      %p201 = pneg %p195
      %p202 = scmp.eq.s32.totalorder %s28, 3
      %p203 = por %p201, %p202
      %p204 = scmp.ne.s32.totalorder %s196, %s199
      %p205 = scmp.eq.s32.totalorder %s28, 0
      %p206 = por %p204, %p205
      %p207 = scmp.ne.s32.totalorder %s196, %s199
      %p208 = scmp.eq.s32.totalorder %s33, 3
      %p209 = por %p207, %p208
      %p210 = scmp.ne.s32.totalorder %s199, %s200
      %p211 = scmp.eq.s32.totalorder %s33, 0
      %p212 = por %p210, %p211
      %p213 = scmp.ne.s32.totalorder %s199, %s200
      %p214 = scmp.eq.s32.totalorder %s34, 3
      %p215 = por %p213, %p214
      %p217 = scmp.ne.s32.totalorder %s200, %s216
      %p218 = scmp.eq.s32.totalorder %s34, 0
      %p219 = por %p217, %p218
      %s220 = ssub.s32 %s36, %s43
      %p221 = scmp.eq.s32.totalorder %s220, 0
      %s223 = sadd.s32 %s222, 1
      %s224 = scalar_select %p221, %s222, %s223
      %p227 = pneg %p221
      %p228 = scmp.eq.s32.totalorder %s28, 3
      %p229 = por %p227, %p228
      %p230 = scmp.ne.s32.totalorder %s222, %s225
      %p231 = scmp.eq.s32.totalorder %s28, 0
      %p232 = por %p230, %p231
      %p233 = scmp.ne.s32.totalorder %s222, %s225
      %p234 = scmp.eq.s32.totalorder %s33, 3
      %p235 = por %p233, %p234
      %p236 = scmp.ne.s32.totalorder %s225, %s226
      %p237 = scmp.eq.s32.totalorder %s33, 0
      %p238 = por %p236, %p237
      %p239 = scmp.ne.s32.totalorder %s225, %s226
      %p240 = scmp.eq.s32.totalorder %s34, 3
      %p241 = por %p239, %p240
      %p243 = scmp.ne.s32.totalorder %s226, %s242
      %p244 = scmp.eq.s32.totalorder %s34, 0
      %p245 = por %p243, %p244
      %s246 = ssub.s32 %s36, %s43
      %p247 = scmp.eq.s32.totalorder %s246, 0
      %s249 = sadd.s32 %s248, 1
      %s250 = scalar_select %p247, %s248, %s249
      %p253 = pneg %p247
      %p254 = scmp.eq.s32.totalorder %s28, 3
      %p255 = por %p253, %p254
      %p256 = scmp.ne.s32.totalorder %s248, %s251
      %p257 = scmp.eq.s32.totalorder %s28, 0
      %p258 = por %p256, %p257
      %p259 = scmp.ne.s32.totalorder %s248, %s251
      %p260 = scmp.eq.s32.totalorder %s33, 3
      %p261 = por %p259, %p260
      %p262 = scmp.ne.s32.totalorder %s251, %s252
      %p263 = scmp.eq.s32.totalorder %s33, 0
      %p264 = por %p262, %p263
      %p265 = scmp.ne.s32.totalorder %s251, %s252
      %p266 = scmp.eq.s32.totalorder %s34, 3
      %p267 = por %p265, %p266
      %p269 = scmp.ne.s32.totalorder %s252, %s268
      %p270 = scmp.eq.s32.totalorder %s34, 0
      %p271 = por %p269, %p270
      %s272 = ssub.s32 %s36, %s43
      %p273 = scmp.eq.s32.totalorder %s272, 0
      %s275 = sadd.s32 %s274, 1
      %s276 = scalar_select %p273, %s274, %s275
      %p279 = pneg %p273
      %p280 = scmp.eq.s32.totalorder %s28, 3
      %p281 = por %p279, %p280
      %p282 = scmp.ne.s32.totalorder %s274, %s277
      %p283 = scmp.eq.s32.totalorder %s28, 0
      %p284 = por %p282, %p283
      %p285 = scmp.ne.s32.totalorder %s274, %s277
      %p286 = scmp.eq.s32.totalorder %s33, 3
      %p287 = por %p285, %p286
      %p288 = scmp.ne.s32.totalorder %s277, %s278
      %p289 = scmp.eq.s32.totalorder %s33, 0
      %p290 = por %p288, %p289
      %p291 = scmp.ne.s32.totalorder %s277, %s278
      %p292 = scmp.eq.s32.totalorder %s34, 3
      %p293 = por %p291, %p292
      %p295 = scmp.ne.s32.totalorder %s278, %s294
      %p296 = scmp.eq.s32.totalorder %s34, 0
      %p297 = por %p295, %p296
      %s298 = ssub.s32 %s36, %s43
      %p299 = scmp.eq.s32.totalorder %s298, 0
      %s301 = sadd.s32 %s300, 1
      %s302 = scalar_select %p299, %s300, %s301
      %p305 = pneg %p299
      %p306 = scmp.eq.s32.totalorder %s28, 3
      %p307 = por %p305, %p306
      %p308 = scmp.ne.s32.totalorder %s300, %s303
      %p309 = scmp.eq.s32.totalorder %s28, 0
      %p310 = por %p308, %p309
      %p311 = scmp.ne.s32.totalorder %s300, %s303
      %p312 = scmp.eq.s32.totalorder %s33, 3
      %p313 = por %p311, %p312
      %p314 = scmp.ne.s32.totalorder %s303, %s304
      %p315 = scmp.eq.s32.totalorder %s33, 0
      %p316 = por %p314, %p315
      %p317 = scmp.ne.s32.totalorder %s303, %s304
      %p318 = scmp.eq.s32.totalorder %s34, 3
      %p319 = por %p317, %p318
      %p321 = scmp.ne.s32.totalorder %s304, %s320
      %p322 = scmp.eq.s32.totalorder %s34, 0
      %p323 = por %p321, %p322
      %s324 = ssub.s32 %s36, %s43
      %p325 = scmp.eq.s32.totalorder %s324, 0
      %s327 = sadd.s32 %s326, 1
      %s328 = scalar_select %p325, %s326, %s327
      %p331 = pneg %p325
      %p332 = scmp.eq.s32.totalorder %s28, 3
      %p333 = por %p331, %p332
      %p334 = scmp.ne.s32.totalorder %s326, %s329
      %p335 = scmp.eq.s32.totalorder %s28, 0
      %p336 = por %p334, %p335
      %p337 = scmp.ne.s32.totalorder %s326, %s329
      %p338 = scmp.eq.s32.totalorder %s33, 3
      %p339 = por %p337, %p338
      %p340 = scmp.ne.s32.totalorder %s329, %s330
      %p341 = scmp.eq.s32.totalorder %s33, 0
      %p342 = por %p340, %p341
      %p343 = scmp.ne.s32.totalorder %s329, %s330
      %p344 = scmp.eq.s32.totalorder %s34, 3
      %p345 = por %p343, %p344
      %p347 = scmp.ne.s32.totalorder %s330, %s346
      %p348 = scmp.eq.s32.totalorder %s34, 0
      %p349 = por %p347, %p348
      %s350 = ssub.s32 %s36, %s43
      %p351 = scmp.eq.s32.totalorder %s350, 0
      %s353 = sadd.s32 %s352, 1
      %s354 = scalar_select %p351, %s352, %s353
      %p357 = pneg %p351
      %p358 = scmp.eq.s32.totalorder %s28, 3
      %p359 = por %p357, %p358
      %p360 = scmp.ne.s32.totalorder %s352, %s355
      %p361 = scmp.eq.s32.totalorder %s28, 0
      %p362 = por %p360, %p361
      %p363 = scmp.ne.s32.totalorder %s352, %s355
      %p364 = scmp.eq.s32.totalorder %s33, 3
      %p365 = por %p363, %p364
      %p366 = scmp.ne.s32.totalorder %s355, %s356
      %p367 = scmp.eq.s32.totalorder %s33, 0
      %p368 = por %p366, %p367
      %p369 = scmp.ne.s32.totalorder %s355, %s356
      %p370 = scmp.eq.s32.totalorder %s34, 3
      %p371 = por %p369, %p370
      %p373 = scmp.ne.s32.totalorder %s356, %s372
      %p374 = scmp.eq.s32.totalorder %s34, 0
      %p375 = por %p373, %p374
      %s376 = ssub.s32 %s36, %s43
      %p377 = scmp.eq.s32.totalorder %s376, 0
      %s379 = sadd.s32 %s378, 1
      %s380 = scalar_select %p377, %s378, %s379
      %p383 = pneg %p377
      %p384 = scmp.eq.s32.totalorder %s28, 3
      %p385 = por %p383, %p384
      %p386 = scmp.ne.s32.totalorder %s378, %s381
      %p387 = scmp.eq.s32.totalorder %s28, 0
      %p388 = por %p386, %p387
      %p389 = scmp.ne.s32.totalorder %s378, %s381
      %p390 = scmp.eq.s32.totalorder %s33, 3
      %p391 = por %p389, %p390
      %p392 = scmp.ne.s32.totalorder %s381, %s382
      %p393 = scmp.eq.s32.totalorder %s33, 0
      %p394 = por %p392, %p393
      %p395 = scmp.ne.s32.totalorder %s381, %s382
      %p396 = scmp.eq.s32.totalorder %s34, 3
      %p397 = por %p395, %p396
      %p399 = scmp.ne.s32.totalorder %s382, %s398
      %p400 = scmp.eq.s32.totalorder %s34, 0
      %p401 = por %p399, %p400
      %s402 = ssub.s32 %s36, %s43
      %p403 = scmp.eq.s32.totalorder %s402, 0
      %s405 = sadd.s32 %s404, 1
      %s406 = scalar_select %p403, %s404, %s405
      %p409 = pneg %p403
      %p410 = scmp.eq.s32.totalorder %s28, 3
      %p411 = por %p409, %p410
      %p412 = scmp.ne.s32.totalorder %s404, %s407
      %p413 = scmp.eq.s32.totalorder %s28, 0
      %p414 = por %p412, %p413
      %p415 = scmp.ne.s32.totalorder %s404, %s407
      %p416 = scmp.eq.s32.totalorder %s33, 3
      %p417 = por %p415, %p416
      %p418 = scmp.ne.s32.totalorder %s407, %s408
      %p419 = scmp.eq.s32.totalorder %s33, 0
      %p420 = por %p418, %p419
      %p421 = scmp.ne.s32.totalorder %s407, %s408
      %p422 = scmp.eq.s32.totalorder %s34, 3
      %p423 = por %p421, %p422
      %p425 = scmp.ne.s32.totalorder %s408, %s424
      %p426 = scmp.eq.s32.totalorder %s34, 0
      %p427 = por %p425, %p426
      %s428 = ssub.s32 %s36, %s43
      %p429 = scmp.eq.s32.totalorder %s428, 0
      %s431 = sadd.s32 %s430, 1
      %s432 = scalar_select %p429, %s430, %s431
      %p435 = pneg %p429
      %p436 = scmp.eq.s32.totalorder %s28, 3
      %p437 = por %p435, %p436
      %p438 = scmp.ne.s32.totalorder %s430, %s433
      %p439 = scmp.eq.s32.totalorder %s28, 0
      %p440 = por %p438, %p439
      %p441 = scmp.ne.s32.totalorder %s430, %s433
      %p442 = scmp.eq.s32.totalorder %s33, 3
      %p443 = por %p441, %p442
      %p444 = scmp.ne.s32.totalorder %s433, %s434
      %p445 = scmp.eq.s32.totalorder %s33, 0
      %p446 = por %p444, %p445
      %p447 = scmp.ne.s32.totalorder %s433, %s434
      %p448 = scmp.eq.s32.totalorder %s34, 3
      %p449 = por %p447, %p448
      %p451 = scmp.ne.s32.totalorder %s434, %s450
      %p452 = scmp.eq.s32.totalorder %s34, 0
      %p453 = por %p451, %p452
      %s454 = ssub.s32 %s36, %s43
      %p455 = scmp.eq.s32.totalorder %s454, 0
      %s457 = sadd.s32 %s456, 1
      %s458 = scalar_select %p455, %s456, %s457
      %p461 = pneg %p455
      %p462 = scmp.eq.s32.totalorder %s28, 3
      %p463 = por %p461, %p462
      %p464 = scmp.ne.s32.totalorder %s456, %s459
      %p465 = scmp.eq.s32.totalorder %s28, 0
      %p466 = por %p464, %p465
      %p467 = scmp.ne.s32.totalorder %s456, %s459
      %p468 = scmp.eq.s32.totalorder %s33, 3
      %p469 = por %p467, %p468
      %p470 = scmp.ne.s32.totalorder %s459, %s460
      %p471 = scmp.eq.s32.totalorder %s33, 0
      %p472 = por %p470, %p471
      %p473 = scmp.ne.s32.totalorder %s459, %s460
      %p474 = scmp.eq.s32.totalorder %s34, 3
      %p475 = por %p473, %p474
      %p477 = scmp.ne.s32.totalorder %s460, %s476
      %p478 = scmp.eq.s32.totalorder %s34, 0
      %p479 = por %p477, %p478
      %s481 = sadd.s32 %s480, 1
      %p484 = scmp.eq.s32.totalorder %s28, 3
      %p485 = scmp.ne.s32.totalorder %s480, %s482
      %p486 = scmp.eq.s32.totalorder %s28, 0
      %p487 = por %p485, %p486
      %p488 = scmp.ne.s32.totalorder %s480, %s482
      %p489 = scmp.eq.s32.totalorder %s33, 3
      %p490 = por %p488, %p489
      %p491 = scmp.ne.s32.totalorder %s482, %s483
      %p492 = scmp.eq.s32.totalorder %s33, 0
      %p493 = por %p491, %p492
      %p494 = scmp.ne.s32.totalorder %s482, %s483
      %p495 = scmp.eq.s32.totalorder %s34, 3
      %p496 = por %p494, %p495
      %p498 = scmp.ne.s32.totalorder %s483, %s497
      %p499 = scmp.eq.s32.totalorder %s34, 0
      %p500 = por %p498, %p499
      %s502 = sadd.s32 %s501, 1
      %p505 = scmp.eq.s32.totalorder %s28, 3
      %p506 = scmp.ne.s32.totalorder %s501, %s503
      %p507 = scmp.eq.s32.totalorder %s28, 0
      %p508 = por %p506, %p507
      %p509 = scmp.ne.s32.totalorder %s501, %s503
      %p510 = scmp.eq.s32.totalorder %s33, 3
      %p511 = por %p509, %p510
      %p512 = scmp.ne.s32.totalorder %s503, %s504
      %p513 = scmp.eq.s32.totalorder %s33, 0
      %p514 = por %p512, %p513
      %p515 = scmp.ne.s32.totalorder %s503, %s504
      %p516 = scmp.eq.s32.totalorder %s34, 3
      %p517 = por %p515, %p516
      %p519 = scmp.ne.s32.totalorder %s504, %s518
      %p520 = scmp.eq.s32.totalorder %s34, 0
      %p521 = por %p519, %p520
      %s522 = ssub.s32 %s35, %s47
      %p523 = scmp.eq.s32.totalorder %s522, 0
      %s525 = sadd.s32 %s524, 1
      %s526 = scalar_select %p523, %s524, %s525
      %p529 = pneg %p523
      %p530 = scmp.eq.s32.totalorder %s28, 3
      %p531 = por %p529, %p530
      %p532 = scmp.ne.s32.totalorder %s524, %s527
      %p533 = scmp.eq.s32.totalorder %s28, 0
      %p534 = por %p532, %p533
      %p535 = scmp.ne.s32.totalorder %s524, %s527
      %p536 = scmp.eq.s32.totalorder %s33, 3
      %p537 = por %p535, %p536
      %p538 = scmp.ne.s32.totalorder %s527, %s528
      %p539 = scmp.eq.s32.totalorder %s33, 0
      %p540 = por %p538, %p539
      %p541 = scmp.ne.s32.totalorder %s527, %s528
      %p542 = scmp.eq.s32.totalorder %s34, 3
      %p543 = por %p541, %p542
      %p545 = scmp.ne.s32.totalorder %s528, %s544
      %p546 = scmp.eq.s32.totalorder %s34, 0
      %p547 = por %p545, %p546
      %p548 = scmp.le.s32.totalorder 1, %s28
      %p549 = scmp.lt.s32.totalorder %s28, 5
      %p550 = pnand %p548, %p549
      %p551 = pneg %p550
      // Predicated region
      $region9: #{dinov2_backbone_forward.1} parent=5 // pred_check
        _
      $region10: #{dinov2_backbone_forward.1} parent=5 // pred_check_branch
        %553 = sbr.rel (%p550) target = $region12
      $region11: #{dinov2_backbone_forward.1} parent=5 // pred_region
        %s554 = ssub.s32 %s28, 1
        // Predicated region
        $region13: #{dinov2_backbone_forward.1} parent=11 // pred_check
          %p555 = pneg %p87
        $region14: #{dinov2_backbone_forward.1} parent=11 // pred_check_branch
          %557 = sbr.rel (%p555) target = $region16
        $region15: #{dinov2_backbone_forward.1} parent=11 // pred_region
          _
        $region16: #{dinov2_backbone_forward.1} parent=11 // pred_fallthru
          _
        // Predicated region
        $region17: #{dinov2_backbone_forward.1} parent=11 // pred_check
          %p558 = pneg %p108
        $region18: #{dinov2_backbone_forward.1} parent=11 // pred_check_branch
          %560 = sbr.rel (%p558) target = $region20
        $region19: #{dinov2_backbone_forward.1} parent=11 // pred_region
          _
        $region20: #{dinov2_backbone_forward.1} parent=11 // pred_fallthru
          _
        // Predicated region
        $region21: #{dinov2_backbone_forward.1} parent=11 // pred_check
          %p561 = pneg %p493
        $region22: #{dinov2_backbone_forward.1} parent=11 // pred_check_branch
          %563 = sbr.rel (%p561) target = $region24
        $region23: #{dinov2_backbone_forward.1} parent=11 // pred_region
          _
        $region24: #{dinov2_backbone_forward.1} parent=11 // pred_fallthru
          _
        // Predicated region
        $region25: #{dinov2_backbone_forward.1} parent=11 // pred_check
          %p564 = pneg %p514
        $region26: #{dinov2_backbone_forward.1} parent=11 // pred_check_branch
          %566 = sbr.rel (%p564) target = $region28
        $region27: #{dinov2_backbone_forward.1} parent=11 // pred_region
          _
        $region28: #{dinov2_backbone_forward.1} parent=11 // pred_fallthru
          _
      $region12: #{dinov2_backbone_forward.1} parent=5 // pred_fallthru
        _
      %p567 = scmp.lt.s32.totalorder %s28, 4
      // Predicated region
      $region29: #{dinov2_backbone_forward.1} parent=5 // pred_check
        %p568 = pneg %p567
      $region30: #{dinov2_backbone_forward.1} parent=5 // pred_check_branch
        %570 = sbr.rel (%p568) target = $region32
      $region31: #{dinov2_backbone_forward.1} parent=5 // pred_region
        // Predicated region
        $region33: #{dinov2_backbone_forward.1} parent=31 // pred_check
          %p571 = pneg %p60
        $region34: #{dinov2_backbone_forward.1} parent=31 // pred_check_branch
          %573 = sbr.rel (%p571) target = $region36
        $region35: #{dinov2_backbone_forward.1} parent=31 // pred_region
          %p574 = scmp.lt.s32.totalorder %s35, 1
          %s575 = scalar_select %p574, %s35, 1
          %s576 = smul.addr %s575, 2
          %s577 = smul.addr %s576, 4
          %s578 = scalar_lea.vmem %s0, %s577
        $region36: #{dinov2_backbone_forward.1} parent=31 // pred_fallthru
          _
        // Predicated region
        $region37: #{dinov2_backbone_forward.1} parent=31 // pred_check
          %p579 = pneg %p128
        $region38: #{dinov2_backbone_forward.1} parent=31 // pred_check_branch
          %581 = sbr.rel (%p579) target = $region40
        $region39: #{dinov2_backbone_forward.1} parent=31 // pred_region
          %p582 = scmp.lt.s32.totalorder %s36, 1
          %s583 = scalar_select %p582, %s36, 1
          %s584 = smul.addr %s583, 4
          %s585 = smul.addr %s584, 4
          %s586 = scalar_lea.vmem %s3, %s585
        $region40: #{dinov2_backbone_forward.1} parent=31 // pred_fallthru
          _
        // Predicated region
        $region41: #{dinov2_backbone_forward.1} parent=31 // pred_check
          %p587 = pneg %p154
        $region42: #{dinov2_backbone_forward.1} parent=31 // pred_check_branch
          %589 = sbr.rel (%p587) target = $region44
        $region43: #{dinov2_backbone_forward.1} parent=31 // pred_region
          %p590 = scmp.lt.s32.totalorder %s36, 1
          %s591 = scalar_select %p590, %s36, 1
          %s592 = scalar_lea.vmem %s4, %s591
        $region44: #{dinov2_backbone_forward.1} parent=31 // pred_fallthru
          _
        // Predicated region
        $region45: #{dinov2_backbone_forward.1} parent=31 // pred_check
          %p593 = pneg %p180
        $region46: #{dinov2_backbone_forward.1} parent=31 // pred_check_branch
          %595 = sbr.rel (%p593) target = $region48
        $region47: #{dinov2_backbone_forward.1} parent=31 // pred_region
          %p596 = scmp.lt.s32.totalorder %s36, 1
          %s597 = scalar_select %p596, %s36, 1
          %s598 = smul.addr %s597, 4
          %s599 = smul.addr %s598, 4
          %s600 = scalar_lea.vmem %s5, %s599
        $region48: #{dinov2_backbone_forward.1} parent=31 // pred_fallthru
          _
        // Predicated region
        $region49: #{dinov2_backbone_forward.1} parent=31 // pred_check
          %p601 = pneg %p206
        $region50: #{dinov2_backbone_forward.1} parent=31 // pred_check_branch
          %603 = sbr.rel (%p601) target = $region52
        $region51: #{dinov2_backbone_forward.1} parent=31 // pred_region
          %p604 = scmp.lt.s32.totalorder %s36, 1
          %s605 = scalar_select %p604, %s36, 1
          %s606 = scalar_lea.vmem %s6, %s605
        $region52: #{dinov2_backbone_forward.1} parent=31 // pred_fallthru
          _
        // Predicated region
        $region53: #{dinov2_backbone_forward.1} parent=31 // pred_check
          %p607 = pneg %p232
        $region54: #{dinov2_backbone_forward.1} parent=31 // pred_check_branch
          %609 = sbr.rel (%p607) target = $region56
        $region55: #{dinov2_backbone_forward.1} parent=31 // pred_region
          %p610 = scmp.lt.s32.totalorder %s36, 1
          %s611 = scalar_select %p610, %s36, 1
          %s612 = scalar_lea.vmem %s7, %s611
        $region56: #{dinov2_backbone_forward.1} parent=31 // pred_fallthru
          _
        // Predicated region
        $region57: #{dinov2_backbone_forward.1} parent=31 // pred_check
          %p613 = pneg %p258
        $region58: #{dinov2_backbone_forward.1} parent=31 // pred_check_branch
          %615 = sbr.rel (%p613) target = $region60
        $region59: #{dinov2_backbone_forward.1} parent=31 // pred_region
          %p616 = scmp.lt.s32.totalorder %s36, 1
          %s617 = scalar_select %p616, %s36, 1
          %s618 = scalar_lea.vmem %s8, %s617
        $region60: #{dinov2_backbone_forward.1} parent=31 // pred_fallthru
          _
        // Predicated region
        $region61: #{dinov2_backbone_forward.1} parent=31 // pred_check
          %p619 = pneg %p284
        $region62: #{dinov2_backbone_forward.1} parent=31 // pred_check_branch
          %621 = sbr.rel (%p619) target = $region64
        $region63: #{dinov2_backbone_forward.1} parent=31 // pred_region
          %p622 = scmp.lt.s32.totalorder %s36, 1
          %s623 = scalar_select %p622, %s36, 1
          %s624 = scalar_lea.vmem %s9, %s623
        $region64: #{dinov2_backbone_forward.1} parent=31 // pred_fallthru
          _
        // Predicated region
        $region65: #{dinov2_backbone_forward.1} parent=31 // pred_check
          %p625 = pneg %p310
        $region66: #{dinov2_backbone_forward.1} parent=31 // pred_check_branch
          %627 = sbr.rel (%p625) target = $region68
        $region67: #{dinov2_backbone_forward.1} parent=31 // pred_region
          %p628 = scmp.lt.s32.totalorder %s36, 1
          %s629 = scalar_select %p628, %s36, 1
          %s630 = scalar_lea.vmem %s10, %s629
        $region68: #{dinov2_backbone_forward.1} parent=31 // pred_fallthru
          _
        // Predicated region
        $region69: #{dinov2_backbone_forward.1} parent=31 // pred_check
          %p631 = pneg %p336
        $region70: #{dinov2_backbone_forward.1} parent=31 // pred_check_branch
          %633 = sbr.rel (%p631) target = $region72
        $region71: #{dinov2_backbone_forward.1} parent=31 // pred_region
          %p634 = scmp.lt.s32.totalorder %s36, 1
          %s635 = scalar_select %p634, %s36, 1
          %s636 = scalar_lea.vmem %s11, %s635
        $region72: #{dinov2_backbone_forward.1} parent=31 // pred_fallthru
          _
        // Predicated region
        $region73: #{dinov2_backbone_forward.1} parent=31 // pred_check
          %p637 = pneg %p362
        $region74: #{dinov2_backbone_forward.1} parent=31 // pred_check_branch
          %639 = sbr.rel (%p637) target = $region76
        $region75: #{dinov2_backbone_forward.1} parent=31 // pred_region
          %p640 = scmp.lt.s32.totalorder %s36, 1
          %s641 = scalar_select %p640, %s36, 1
          %s642 = smul.addr %s641, 4
          %s643 = smul.addr %s642, 4
          %s644 = scalar_lea.vmem %s12, %s643
        $region76: #{dinov2_backbone_forward.1} parent=31 // pred_fallthru
          _
        // Predicated region
        $region77: #{dinov2_backbone_forward.1} parent=31 // pred_check
          %p645 = pneg %p388
        $region78: #{dinov2_backbone_forward.1} parent=31 // pred_check_branch
          %647 = sbr.rel (%p645) target = $region80
        $region79: #{dinov2_backbone_forward.1} parent=31 // pred_region
          %p648 = scmp.lt.s32.totalorder %s36, 1
          %s649 = scalar_select %p648, %s36, 1
          %s650 = scalar_lea.vmem %s13, %s649
        $region80: #{dinov2_backbone_forward.1} parent=31 // pred_fallthru
          _
        // Predicated region
        $region81: #{dinov2_backbone_forward.1} parent=31 // pred_check
          %p651 = pneg %p414
        $region82: #{dinov2_backbone_forward.1} parent=31 // pred_check_branch
          %653 = sbr.rel (%p651) target = $region84
        $region83: #{dinov2_backbone_forward.1} parent=31 // pred_region
          %p654 = scmp.lt.s32.totalorder %s36, 1
          %s655 = scalar_select %p654, %s36, 1
          %s656 = smul.addr %s655, 16
          %s657 = smul.addr %s656, 4
          %s658 = scalar_lea.vmem %s14, %s657
        $region84: #{dinov2_backbone_forward.1} parent=31 // pred_fallthru
          _
        // Predicated region
        $region85: #{dinov2_backbone_forward.1} parent=31 // pred_check
          %p659 = pneg %p440
        $region86: #{dinov2_backbone_forward.1} parent=31 // pred_check_branch
          %661 = sbr.rel (%p659) target = $region88
        $region87: #{dinov2_backbone_forward.1} parent=31 // pred_region
          %p662 = scmp.lt.s32.totalorder %s36, 1
          %s663 = scalar_select %p662, %s36, 1
          %s664 = scalar_lea.vmem %s15, %s663
        $region88: #{dinov2_backbone_forward.1} parent=31 // pred_fallthru
          _
        // Predicated region
        $region89: #{dinov2_backbone_forward.1} parent=31 // pred_check
          %p665 = pneg %p466
        $region90: #{dinov2_backbone_forward.1} parent=31 // pred_check_branch
          %667 = sbr.rel (%p665) target = $region92
        $region91: #{dinov2_backbone_forward.1} parent=31 // pred_region
          %p668 = scmp.lt.s32.totalorder %s36, 1
          %s669 = scalar_select %p668, %s36, 1
          %s670 = scalar_lea.vmem %s16, %s669
        $region92: #{dinov2_backbone_forward.1} parent=31 // pred_fallthru
          _
      $region32: #{dinov2_backbone_forward.1} parent=5 // pred_fallthru
        _
      %p671 = scmp.le.s32.totalorder 1, %s28
      %p672 = scmp.lt.s32.totalorder %s28, 5
      %p673 = pnand %p671, %p672
      %p674 = pneg %p673
      // Predicated region
      $region93: #{dinov2_backbone_forward.1} parent=5 // pred_check
        _
      $region94: #{dinov2_backbone_forward.1} parent=5 // pred_check_branch
        %676 = sbr.rel (%p673) target = $region96
      $region95: #{dinov2_backbone_forward.1} parent=5 // pred_region
        %s677 = ssub.s32 %s28, 1
        %p678 = scmp.lt.s32.totalorder %s37, 1
        %s679 = scalar_select %p678, %s37, 1
        %s680 = smul.addr %s679, 2
        %s681 = smul.addr %s680, 4
        %s682 = scalar_lea.vmem %s0, %s681
        %p683 = pneg %p66
        %p684 = pneg %p63
        %p685 = pneg %p87
        %p686 = pneg %p84
        %p687 = pneg %p108
        %p688 = pneg %p105
        %p689 = scmp.lt.s32.totalorder %s38, 1
        %s690 = scalar_select %p689, %s38, 1
        %s691 = smul.addr %s690, 4
        %s692 = smul.addr %s691, 4
        %s693 = scalar_lea.vmem %s3, %s692
        %p694 = pneg %p134
        %p695 = pneg %p131
        %p696 = scmp.lt.s32.totalorder %s38, 1
        %s697 = scalar_select %p696, %s38, 1
        %s698 = scalar_lea.vmem %s4, %s697
        %p699 = pneg %p160
        %p700 = pneg %p157
        %p701 = scmp.lt.s32.totalorder %s38, 1
        %s702 = scalar_select %p701, %s38, 1
        %s703 = smul.addr %s702, 4
        %s704 = smul.addr %s703, 4
        %s705 = scalar_lea.vmem %s5, %s704
        %p706 = pneg %p186
        %p707 = pneg %p183
        %p708 = scmp.lt.s32.totalorder %s38, 1
        %s709 = scalar_select %p708, %s38, 1
        %s710 = scalar_lea.vmem %s6, %s709
        %p711 = pneg %p212
        %p712 = pneg %p209
        %p713 = scmp.lt.s32.totalorder %s38, 1
        %s714 = scalar_select %p713, %s38, 1
        %s715 = scalar_lea.vmem %s7, %s714
        %p716 = pneg %p238
        %p717 = pneg %p235
        %p718 = scmp.lt.s32.totalorder %s38, 1
        %s719 = scalar_select %p718, %s38, 1
        %s720 = scalar_lea.vmem %s8, %s719
        %p721 = pneg %p264
        %p722 = pneg %p261
        %p723 = scmp.lt.s32.totalorder %s38, 1
        %s724 = scalar_select %p723, %s38, 1
        %s725 = scalar_lea.vmem %s9, %s724
        %p726 = pneg %p290
        %p727 = pneg %p287
        %p728 = scmp.lt.s32.totalorder %s38, 1
        %s729 = scalar_select %p728, %s38, 1
        %s730 = scalar_lea.vmem %s10, %s729
        %p731 = pneg %p316
        %p732 = pneg %p313
        %p733 = scmp.lt.s32.totalorder %s38, 1
        %s734 = scalar_select %p733, %s38, 1
        %s735 = scalar_lea.vmem %s11, %s734
        %p736 = pneg %p342
        %p737 = pneg %p339
        %p738 = scmp.lt.s32.totalorder %s38, 1
        %s739 = scalar_select %p738, %s38, 1
        %s740 = smul.addr %s739, 4
        %s741 = smul.addr %s740, 4
        %s742 = scalar_lea.vmem %s12, %s741
        %p743 = pneg %p368
        %p744 = pneg %p365
        %p745 = scmp.lt.s32.totalorder %s38, 1
        %s746 = scalar_select %p745, %s38, 1
        %s747 = scalar_lea.vmem %s13, %s746
        %p748 = pneg %p394
        %p749 = pneg %p391
        %p750 = scmp.lt.s32.totalorder %s38, 1
        %s751 = scalar_select %p750, %s38, 1
        %s752 = smul.addr %s751, 16
        %s753 = smul.addr %s752, 4
        %s754 = scalar_lea.vmem %s14, %s753
        %p755 = pneg %p420
        %p756 = pneg %p417
        %p757 = scmp.lt.s32.totalorder %s38, 1
        %s758 = scalar_select %p757, %s38, 1
        %s759 = scalar_lea.vmem %s15, %s758
        %p760 = pneg %p446
        %p761 = pneg %p443
        %p762 = scmp.lt.s32.totalorder %s38, 1
        %s763 = scalar_select %p762, %s38, 1
        %s764 = scalar_lea.vmem %s16, %s763
        %p765 = pneg %p472
        %p766 = pneg %p469
        %p767 = pneg %p493
        %p768 = pneg %p490
        %p769 = pneg %p514
        %p770 = pneg %p511
        %p771 = pneg %p540
        %p772 = pneg %p537
        %s773 = sand.u32 %s527, 1
        %s774 = scalar_lea.sflag [#allocation4], %s773
        %s775 = sand.u32 %s527, 1
        %s776 = smul.addr %s775, 16
        %s777 = scalar_lea.vmem [#allocation3], %s776
        %p778 = scmp.lt.s32.totalorder %s37, 1
        %s779 = scalar_select %p778, %s37, 1
        %s780 = smul.addr %s779, 2
        %s781 = smul.addr %s780, 4
        %s782 = scalar_lea.vmem %s0, %s781
        %p783 = scmp.lt.s32.totalorder %s38, 1
        %s784 = scalar_select %p783, %s38, 1
        %s785 = smul.addr %s784, 4
        %s786 = smul.addr %s785, 4
        %s787 = scalar_lea.vmem %s3, %s786
        %p788 = scmp.lt.s32.totalorder %s38, 1
        %s789 = scalar_select %p788, %s38, 1
        %s790 = scalar_lea.vmem %s4, %s789
        %p791 = scmp.lt.s32.totalorder %s38, 1
        %s792 = scalar_select %p791, %s38, 1
        %s793 = smul.addr %s792, 4
        %s794 = smul.addr %s793, 4
        %s795 = scalar_lea.vmem %s5, %s794
        %p796 = scmp.lt.s32.totalorder %s38, 1
        %s797 = scalar_select %p796, %s38, 1
        %s798 = scalar_lea.vmem %s6, %s797
        %p799 = scmp.lt.s32.totalorder %s38, 1
        %s800 = scalar_select %p799, %s38, 1
        %s801 = scalar_lea.vmem %s7, %s800
        %p802 = scmp.lt.s32.totalorder %s38, 1
        %s803 = scalar_select %p802, %s38, 1
        %s804 = scalar_lea.vmem %s8, %s803
        %p805 = scmp.lt.s32.totalorder %s38, 1
        %s806 = scalar_select %p805, %s38, 1
        %s807 = scalar_lea.vmem %s9, %s806
        %p808 = scmp.lt.s32.totalorder %s38, 1
        %s809 = scalar_select %p808, %s38, 1
        %s810 = scalar_lea.vmem %s10, %s809
        %p811 = scmp.lt.s32.totalorder %s38, 1
        %s812 = scalar_select %p811, %s38, 1
        %s813 = scalar_lea.vmem %s11, %s812
        %p814 = scmp.lt.s32.totalorder %s38, 1
        %s815 = scalar_select %p814, %s38, 1
        %s816 = smul.addr %s815, 4
        %s817 = smul.addr %s816, 4
        %s818 = scalar_lea.vmem %s12, %s817
        %p819 = scmp.lt.s32.totalorder %s38, 1
        %s820 = scalar_select %p819, %s38, 1
        %s821 = scalar_lea.vmem %s13, %s820
        %p822 = scmp.lt.s32.totalorder %s38, 1
        %s823 = scalar_select %p822, %s38, 1
        %s824 = smul.addr %s823, 16
        %s825 = smul.addr %s824, 4
        %s826 = scalar_lea.vmem %s14, %s825
        %p827 = scmp.lt.s32.totalorder %s38, 1
        %s828 = scalar_select %p827, %s38, 1
        %s829 = scalar_lea.vmem %s15, %s828
        %p830 = scmp.lt.s32.totalorder %s38, 1
        %s831 = scalar_select %p830, %s38, 1
        %s832 = scalar_lea.vmem %s16, %s831
        %p834 = scmp.eq.s32.totalorder %s38, 0
        // Predicated region
        $region97: #{dinov2_backbone_forward.1} parent=95 // pred_check
          %p835 = pneg %p834
        $region98: #{dinov2_backbone_forward.1} parent=95 // pred_check_branch
          %837 = sbr.rel (%p835) target = $region100
        $region99: #{dinov2_backbone_forward.1} parent=95 // pred_region
          %v838 = vld [vmem:[%s782] sm:$0xf]
          %v839 = vld [vmem:[%s782 + $0x4] sm:$0xf]
          %v840 = vld [vmem:[%s1] sm:$0xf]
          %v841 = vld [vmem:[%s1 + $0x4] sm:$0xf]
          %v842 = vld [vmem:[%s1 + $0x8] sm:$0xf]
          %v843 = vld [vmem:[%s1 + $0xc] sm:$0xf]
          %v844 = vld [vmem:[%s1 + $0x10] sm:$0xf]
          %v845 = vld [vmem:[%s1 + $0x14] sm:$0xf]
          %v848 = vunpack.c.l.b16 %v838
          %v849 = vunpack.c.l.b16 %v839
          %v850 = vpack.c.b16 %v849, %v848
          %v857 = vunpack.c.l.b16 %v840
          %v858 = vunpack.c.l.b16 %v841
          %v859 = vunpack.c.l.b16 %v842
          %v860 = vunpack.c.l.b16 %v843
          %v861 = vunpack.c.l.b16 %v844
          %v862 = vunpack.c.l.b16 %v845
          %v863 = vpack.c.b16 %v858, %v857
          %v864 = vpack.c.b16 %v860, %v859
          %v865 = vpack.c.b16 %v862, %v861
          %vm869 = vcmask 392192
          %v871 = vsel %vm869, %v850, 0
          %873 = vmatprep.subr.bf16.mxu0 0
          %874 = vmatpush1.bf16.msra.mxu0 %v863
          %875 = vmatprep.subr.bf16.mxu0 0
          %876 = vmatpush1.bf16.msra.mxu0 %v864
          %877 = vmatprep.subr.bf16.mxu0 0
          %878 = vmatpush1.bf16.msra.mxu0 %v865
          %879 = vmatprep.subr.bf16.mxu0 0
          %880 = vmatpush1.bf16.msra.mxu0 0
          %881 = vmatprep.subr.bf16.mxu0 0
          %882 = vmatpush1.bf16.msra.mxu0 0
          %883 = vmatprep.subr.bf16.mxu0 0
          %884 = vmatpush1.bf16.msra.mxu0 0
          %885 = vmatprep.subr.bf16.mxu0 0
          %886 = vmatpush1.bf16.msra.mxu0 0
          %887 = vmatprep.subr.bf16.mxu0 0
          %888 = vmatpush1.bf16.msra.mxu0 0
          %889 = vmatprep.subr.bf16.mxu0 0
          %890 = vmatpush1.bf16.msra.mxu0 0
          %891 = vmatprep.subr.bf16.mxu0 0
          %892 = vmatpush1.bf16.msra.mxu0 0
          %893 = vmatprep.subr.bf16.mxu0 0
          %894 = vmatpush1.bf16.msra.mxu0 0
          %895 = vmatprep.subr.bf16.mxu0 0
          %896 = vmatpush1.bf16.msra.mxu0 0
          %897 = vmatprep.subr.bf16.mxu0 0
          %898 = vmatpush1.bf16.msra.mxu0 0
          %899 = vmatprep.subr.bf16.mxu0 0
          %900 = vmatpush1.bf16.msra.mxu0 0
          %901 = vmatprep.subr.bf16.mxu0 0
          %902 = vmatpush1.bf16.msra.mxu0 0
          %903 = vmatprep.subr.bf16.mxu0 0
          %904 = vmatpush1.bf16.msra.mxu0 0
          %905 = vmatprep.mubr.bf16.mxu0 0
          %906 = vmatmul.mubr.bf16.gmra.mrb[0].mxu0 %v871
          %v907 = vpop.f32.mrb[0].mxu0
          %v908 = vadd.f32 0.0, %v907
          %v909 = vpop.f32.mrb[0].mxu0
          %v910 = vpop.f32.mrb[0].mxu0
          %v911 = vadd.f32 0.0, %v910
          %v912 = vpop.f32.mrb[0].mxu0
          %913 = vdwg.mxu0
          %vm916 = vcmask 1040384
          %v917 = vrot.slane %v908, 7
          %v918 = vrot.slane %v911, 7
          %v919 = vsel %vm916, %v917, %v918
          %v923 = vsel %vm916, 0.0, %v917
          %v924 = vld [vmem:[%s2] sm:$0xff]
          %v925 = vld [vmem:[%s2 + $0x8] sm:$0xff]
          %v926 = vld [vmem:[%s2 + $0x10] sm:$0x1]
          %v927 = vadd.f32 %v923, %v924
          %v928 = vadd.f32 %v919, %v925
          %v929 = vadd.f32 %v918, %v926
          %vm930 = vcmask 261120
          %931 = vst.msk [vmem:[#allocation2] sm:$0xff] %vm930, %v927
          %932 = vst.msk [vmem:[#allocation2 + $0x8] sm:$0xff] %vm930, %v928
          %vm933 = vcmask 253952
          %934 = vst.msk [vmem:[#allocation2 + $0x10] sm:$0x1] %vm933, %v929
        $region100: #{dinov2_backbone_forward.1} parent=95 // pred_fallthru
          _
        %v935 = vld [vmem:[#allocation2] sm:$0xff]
        %v936 = vld [vmem:[#allocation2 + $0x8] sm:$0xff]
        %v937 = vld [vmem:[#allocation2 + $0x10] sm:$0x1]
        %v938 = vld [vmem:[%s804] sm:$0x1]
        %v939 = vld [vmem:[%s807] sm:$0x1]
        %vm940 = vcmask 261120
        %v941 = vsel %vm940, %v935, 0.0
        %942 = vadd.xlane.f32.xlu0 %v941
        %v943 = vpop.xlane.xlu0 %942
        %v944 = vsel %vm940, %v936, 0.0
        %945 = vadd.xlane.f32.xlu0 %v944
        %v946 = vpop.xlane.xlu0 %945
        %vm947 = vcmask 253952
        %v948 = vsel %vm947, %v937, 0.0
        %949 = vadd.xlane.f32.xlu0 %v948
        %v950 = vpop.xlane.xlu0 %949
        %v951 = vrcp.pop 32.0
        %v952 = vmul.f32 %v943, %v951
        %v953 = vmul.f32 %v946, %v951
        %v954 = vmul.f32 %v950, %v951
        %v955 = vsub.f32 %v935, %v952
        %v956 = vsub.f32 %v936, %v953
        %v957 = vsub.f32 %v937, %v954
        %v958 = vmul.f32 %v955, %v955
        %v959 = vmul.f32 %v956, %v956
        %v960 = vmul.f32 %v957, %v957
        %v961 = vsel %vm940, %v958, 0.0
        %962 = vadd.xlane.f32.xlu0 %v961
        %v963 = vpop.xlane.xlu0 %962
        %v964 = vsel %vm940, %v959, 0.0
        %965 = vadd.xlane.f32.xlu0 %v964
        %v966 = vpop.xlane.xlu0 %965
        %v967 = vsel %vm947, %v960, 0.0
        %968 = vadd.xlane.f32.xlu0 %v967
        %v969 = vpop.xlane.xlu0 %968
        %v970 = vmul.f32 %v963, %v951
        %v971 = vmul.f32 %v966, %v951
        %v972 = vmul.f32 %v969, %v951
        %v973 = vadd.f32 %v970, 1e-06
        %v974 = vadd.f32 %v971, 1e-06
        %v975 = vadd.f32 %v972, 1e-06
        %v976 = vrsqrt.pop %v973
        %v977 = vrsqrt.pop %v974
        %v978 = vrsqrt.pop %v975
        %v979 = vmul.f32 %v955, %v976
        %v980 = vmul.f32 %v956, %v977
        %v981 = vmul.f32 %v957, %v978
        %v983 = vlaneseq
        %v984 = vshrl.u32 %v983, 7
        %v985 = vsub.s32 0, %v984
        %v986 = vrot.slane %v938, %v985
        %v988 = vmul.f32 %v979, %v986
        %v989 = vmul.f32 %v980, %v986
        %v990 = vmul.f32 %v981, %v986
        %v992 = vlaneseq
        %v993 = vshrl.u32 %v992, 7
        %v994 = vsub.s32 0, %v993
        %v995 = vrot.slane %v939, %v994
        %v997 = vadd.f32 %v988, %v995
        %v998 = vadd.f32 %v989, %v995
        %v999 = vadd.f32 %v990, %v995
        %v1000 = vld [vmem:[%s787] sm:$0xf]
        %v1001 = vld [vmem:[%s787 + $0x4] sm:$0xf]
        %v1002 = vld [vmem:[%s787 + $0x8] sm:$0xf]
        %v1003 = vld [vmem:[%s787 + $0xc] sm:$0xf]
        %v1004 = vpack.c.bf16 %v998, %v997
        %v1005 = vpack.c.bf16 %v999, %v999
        %v1006 = vld [vmem:[%s790] sm:$0x1]
        %v1008 = vlaneseq
        %v1009 = vshrl.u32 %v1008, 7
        %v1010 = vsub.s32 0, %v1009
        %v1011 = vrot.slane %v1006, %v1010
        %v1017 = vunpack.c.l.b16 %v1000
        %v1018 = vunpack.c.l.b16 %v1001
        %v1019 = vunpack.c.l.b16 %v1002
        %v1020 = vunpack.c.l.b16 %v1003
        %v1021 = vpack.c.b16 %v1018, %v1017
        %v1022 = vpack.c.b16 %v1020, %v1019
        %v1026 = vsel %vm940, %v1004, 0
        %v1029 = vsel %vm940, %v1005, 0
        %1031 = vmatprep.subr.bf16.mxu0 0
        %1032 = vmatpush1.bf16.msra.mxu0 %v1021
        %1033 = vmatprep.subr.bf16.mxu0 0
        %1034 = vmatpush1.bf16.msra.mxu0 %v1022
        %1035 = vmatprep.subr.bf16.mxu0 0
        %1036 = vmatpush1.bf16.msra.mxu0 0
        %1037 = vmatprep.subr.bf16.mxu0 0
        %1038 = vmatpush1.bf16.msra.mxu0 0
        %1039 = vmatprep.subr.bf16.mxu0 0
        %1040 = vmatpush1.bf16.msra.mxu0 0
        %1041 = vmatprep.subr.bf16.mxu0 0
        %1042 = vmatpush1.bf16.msra.mxu0 0
        %1043 = vmatprep.subr.bf16.mxu0 0
        %1044 = vmatpush1.bf16.msra.mxu0 0
        %1045 = vmatprep.subr.bf16.mxu0 0
        %1046 = vmatpush1.bf16.msra.mxu0 0
        %1047 = vmatprep.subr.bf16.mxu0 0
        %1048 = vmatpush1.bf16.msra.mxu0 0
        %1049 = vmatprep.subr.bf16.mxu0 0
        %1050 = vmatpush1.bf16.msra.mxu0 0
        %1051 = vmatprep.subr.bf16.mxu0 0
        %1052 = vmatpush1.bf16.msra.mxu0 0
        %1053 = vmatprep.subr.bf16.mxu0 0
        %1054 = vmatpush1.bf16.msra.mxu0 0
        %1055 = vmatprep.subr.bf16.mxu0 0
        %1056 = vmatpush1.bf16.msra.mxu0 0
        %1057 = vmatprep.subr.bf16.mxu0 0
        %1058 = vmatpush1.bf16.msra.mxu0 0
        %1059 = vmatprep.subr.bf16.mxu0 0
        %1060 = vmatpush1.bf16.msra.mxu0 0
        %1061 = vmatprep.subr.bf16.mxu0 0
        %1062 = vmatpush1.bf16.msra.mxu0 0
        %1063 = vmatprep.mubr.bf16.mxu0 0
        %1064 = vmatmul.mubr.bf16.gmra.mrb[0].mxu0 %v1026
        %v1065 = vpop.f32.mrb[0].mxu0
        %v1066 = vadd.f32 %v1011, %v1065
        %v1067 = vpop.f32.mrb[0].mxu0
        %v1068 = vpop.f32.mrb[0].mxu0
        %v1069 = vadd.f32 %v1011, %v1068
        %v1070 = vpop.f32.mrb[0].mxu0
        %1071 = vmatprep.mubr.bf16.mxu0 0
        %1072 = vmatmul.mubr.bf16.gmra.mrb[0].mxu0 %v1029
        %v1073 = vpop.f32.mrb[0].mxu0
        %v1074 = vadd.f32 %v1011, %v1073
        %v1075 = vpop.f32.mrb[0].mxu0
        %v1076 = vpop.f32.mrb[0].mxu0
        %v1077 = vpop.f32.mrb[0].mxu0
        %1078 = vdwg.mxu0
        %v1079 = vmul.f32 %v1066, 0.35355338
        %v1080 = vmul.f32 %v1069, 0.35355338
        %v1081 = vmul.f32 %v1074, 0.35355338
        %v1082 = vpack.c.bf16 %v1080, %v1079
        %v1083 = vpack.c.bf16 %v1081, %v1081
        %v1084 = vpack.c.bf16 %v1069, %v1066
        %v1085 = vpack.c.bf16 %v1074, %v1074
        %1088 = vrot.lane.b32.xlu0 %v1084, 96
        %v1089 = vpop.permute.xlu0 %1088
        %1090 = vrot.lane.b32.xlu0 %v1085, 96
        %v1091 = vpop.permute.xlu0 %1090
        %vm1092 = vcmask 64512
        %v1094 = vsel %vm1092, %v1082, 0
        %v1097 = vsel %vm1092, %v1083, 0
        %v1100 = vsel %vm1092, %v1089, 0
        %v1103 = vsel %vm1092, %v1091, 0
        %1105 = vmatprep.subr.bf16.mxu0 0
        %1106 = vmatpush1.bf16.xpose.msra.mxu0 %v1100
        %1107 = vmatprep.subr.bf16.mxu0 0
        %1108 = vmatpush1.bf16.xpose.msra.mxu0 %v1103
        %1109 = vmatprep.subr.bf16.mxu0 0
        %1110 = vmatpush1.bf16.xpose.msra.mxu0 0
        %1111 = vmatprep.subr.bf16.mxu0 0
        %1112 = vmatpush1.bf16.xpose.msra.mxu0 0
        %1113 = vmatprep.subr.bf16.mxu0 0
        %1114 = vmatpush1.bf16.xpose.msra.mxu0 0
        %1115 = vmatprep.subr.bf16.mxu0 0
        %1116 = vmatpush1.bf16.xpose.msra.mxu0 0
        %1117 = vmatprep.subr.bf16.mxu0 0
        %1118 = vmatpush1.bf16.xpose.msra.mxu0 0
        %1119 = vmatprep.subr.bf16.mxu0 0
        %1120 = vmatpush1.bf16.xpose.msra.mxu0 0
        %1121 = vmatprep.subr.bf16.mxu0 0
        %1122 = vmatpush1.bf16.xpose.msra.mxu0 0
        %1123 = vmatprep.subr.bf16.mxu0 0
        %1124 = vmatpush1.bf16.xpose.msra.mxu0 0
        %1125 = vmatprep.subr.bf16.mxu0 0
        %1126 = vmatpush1.bf16.xpose.msra.mxu0 0
        %1127 = vmatprep.subr.bf16.mxu0 0
        %1128 = vmatpush1.bf16.xpose.msra.mxu0 0
        %1129 = vmatprep.subr.bf16.mxu0 0
        %1130 = vmatpush1.bf16.xpose.msra.mxu0 0
        %1131 = vmatprep.subr.bf16.mxu0 0
        %1132 = vmatpush1.bf16.xpose.msra.mxu0 0
        %1133 = vmatprep.subr.bf16.mxu0 0
        %1134 = vmatpush1.bf16.xpose.msra.mxu0 0
        %1135 = vmatprep.subr.bf16.mxu0 0
        %1136 = vmatpush1.bf16.xpose.msra.mxu0 0
        %1137 = vmatprep.mubr.bf16.mxu0 0
        %1138 = vmatmul.mubr.bf16.gmra.mrb[0].mxu0 %v1094
        %v1139 = vpop.f32.mrb[0].mxu0
        %v1140 = vadd.f32 0.0, %v1139
        %v1141 = vpop.f32.mrb[0].mxu0
        %v1142 = vpop.f32.mrb[0].mxu0
        %v1143 = vadd.f32 0.0, %v1142
        %v1144 = vpop.f32.mrb[0].mxu0
        %1145 = vmatprep.mubr.bf16.mxu0 0
        %1146 = vmatmul.mubr.bf16.gmra.mrb[0].mxu0 %v1097
        %v1147 = vpop.f32.mrb[0].mxu0
        %v1148 = vadd.f32 0.0, %v1147
        %v1149 = vpop.f32.mrb[0].mxu0
        %v1150 = vpop.f32.mrb[0].mxu0
        %v1151 = vpop.f32.mrb[0].mxu0
        %1152 = vdwg.mxu0
        %vm1153 = vcmask 138240
        %v1154 = vsel %vm1153, %v1140, -inf
        %1155 = vmax.xlane.f32.xlu0 %v1154
        %v1156 = vpop.xlane.xlu0 %1155
        %v1157 = vsel %vm1153, %v1143, -inf
        %1158 = vmax.xlane.f32.xlu0 %v1157
        %v1159 = vpop.xlane.xlu0 %1158
        %vm1160 = vcmask 131072
        %v1161 = vsel %vm1160, %v1148, -inf
        %1162 = vmax.xlane.f32.xlu0 %v1161
        %v1163 = vpop.xlane.xlu0 %1162
        %v1164 = vsub.f32 %v1140, %v1156
        %v1165 = vsub.f32 %v1143, %v1159
        %v1166 = vsub.f32 %v1148, %v1163
        %v1167 = vmul.f32 %v1164, 1.442695
        %v1168 = vpow.pop %v1167
        %v1169 = vmul.f32 %v1165, 1.442695
        %v1170 = vpow.pop %v1169
        %v1171 = vmul.f32 %v1166, 1.442695
        %v1172 = vpow.pop %v1171
        %v1173 = vsel %vm1153, %v1168, 0.0
        %1174 = vadd.xlane.f32.xlu0 %v1173
        %v1175 = vpop.xlane.xlu0 %1174
        %v1176 = vsel %vm1153, %v1170, 0.0
        %1177 = vadd.xlane.f32.xlu0 %v1176
        %v1178 = vpop.xlane.xlu0 %1177
        %v1179 = vsel %vm1160, %v1172, 0.0
        %1180 = vadd.xlane.f32.xlu0 %v1179
        %v1181 = vpop.xlane.xlu0 %1180
        %v1182 = vrcp.pop %v1175
        %v1183 = vmul.f32 %v1168, %v1182
        %v1184 = vrcp.pop %v1178
        %v1185 = vmul.f32 %v1170, %v1184
        %v1186 = vrcp.pop %v1181
        %v1187 = vmul.f32 %v1172, %v1186
        %v1188 = vpack.c.bf16 %v1185, %v1183
        %v1189 = vpack.c.bf16 %v1187, %v1187
        %1190 = vrot.lane.b32.xlu0 %v1084, 64
        %v1191 = vpop.permute.xlu0 %1190
        %1192 = vrot.lane.b32.xlu0 %v1085, 64
        %v1193 = vpop.permute.xlu0 %1192
        %v1196 = vsel %vm1153, %v1188, 0
        %v1199 = vsel %vm1153, %v1189, 0
        %vm1201 = vcmask 1040384
        %v1202 = vsel 0, 4294967295, 65535
        %v1203 = vsel %vm1201, %v1202, 0
        %v1205 = vand.u32 %v1193, %v1203
        %1207 = vmatprep.subr.bf16.mxu0 0
        %1208 = vmatpush1.bf16.msra.mxu0 %v1191
        %1209 = vmatprep.subr.bf16.mxu0 0
        %1210 = vmatpush1.bf16.msra.mxu0 %v1205
        %1211 = vmatprep.subr.bf16.mxu0 0
        %1212 = vmatpush1.bf16.msra.mxu0 0
        %1213 = vmatprep.subr.bf16.mxu0 0
        %1214 = vmatpush1.bf16.msra.mxu0 0
        %1215 = vmatprep.subr.bf16.mxu0 0
        %1216 = vmatpush1.bf16.msra.mxu0 0
        %1217 = vmatprep.subr.bf16.mxu0 0
        %1218 = vmatpush1.bf16.msra.mxu0 0
        %1219 = vmatprep.subr.bf16.mxu0 0
        %1220 = vmatpush1.bf16.msra.mxu0 0
        %1221 = vmatprep.subr.bf16.mxu0 0
        %1222 = vmatpush1.bf16.msra.mxu0 0
        %1223 = vmatprep.subr.bf16.mxu0 0
        %1224 = vmatpush1.bf16.msra.mxu0 0
        %1225 = vmatprep.subr.bf16.mxu0 0
        %1226 = vmatpush1.bf16.msra.mxu0 0
        %1227 = vmatprep.subr.bf16.mxu0 0
        %1228 = vmatpush1.bf16.msra.mxu0 0
        %1229 = vmatprep.subr.bf16.mxu0 0
        %1230 = vmatpush1.bf16.msra.mxu0 0
        %1231 = vmatprep.subr.bf16.mxu0 0
        %1232 = vmatpush1.bf16.msra.mxu0 0
        %1233 = vmatprep.subr.bf16.mxu0 0
        %1234 = vmatpush1.bf16.msra.mxu0 0
        %1235 = vmatprep.subr.bf16.mxu0 0
        %1236 = vmatpush1.bf16.msra.mxu0 0
        %1237 = vmatprep.subr.bf16.mxu0 0
        %1238 = vmatpush1.bf16.msra.mxu0 0
        %1239 = vmatprep.mubr.bf16.mxu0 0
        %1240 = vmatmul.mubr.bf16.gmra.mrb[0].mxu0 %v1196
        %v1241 = vpop.f32.mrb[0].mxu0
        %v1242 = vadd.f32 0.0, %v1241
        %v1243 = vpop.f32.mrb[0].mxu0
        %v1244 = vpop.f32.mrb[0].mxu0
        %v1245 = vadd.f32 0.0, %v1244
        %v1246 = vpop.f32.mrb[0].mxu0
        %1247 = vmatprep.mubr.bf16.mxu0 0
        %1248 = vmatmul.mubr.bf16.gmra.mrb[0].mxu0 %v1199
        %v1249 = vpop.f32.mrb[0].mxu0
        %v1250 = vadd.f32 0.0, %v1249
        %v1251 = vpop.f32.mrb[0].mxu0
        %v1252 = vpop.f32.mrb[0].mxu0
        %v1253 = vpop.f32.mrb[0].mxu0
        %1254 = vdwg.mxu0
        %1257 = vrot.lane.b32.xlu0 %v1082, 120
        %v1258 = vpop.permute.xlu0 %1257
        %1259 = vrot.lane.b32.xlu0 %v1083, 120
        %v1260 = vpop.permute.xlu0 %1259
        %1261 = vrot.lane.b32.xlu0 %v1084, 88
        %v1262 = vpop.permute.xlu0 %1261
        %1263 = vrot.lane.b32.xlu0 %v1085, 88
        %v1264 = vpop.permute.xlu0 %1263
        %v1266 = vsel %vm1092, %v1258, 0
        %v1269 = vsel %vm1092, %v1260, 0
        %v1272 = vsel %vm1092, %v1262, 0
        %v1275 = vsel %vm1092, %v1264, 0
        %1277 = vmatprep.subr.bf16.mxu0 0
        %1278 = vmatpush1.bf16.xpose.msra.mxu0 %v1272
        %1279 = vmatprep.subr.bf16.mxu0 0
        %1280 = vmatpush1.bf16.xpose.msra.mxu0 %v1275
        %1281 = vmatprep.subr.bf16.mxu0 0
        %1282 = vmatpush1.bf16.xpose.msra.mxu0 0
        %1283 = vmatprep.subr.bf16.mxu0 0
        %1284 = vmatpush1.bf16.xpose.msra.mxu0 0
        %1285 = vmatprep.subr.bf16.mxu0 0
        %1286 = vmatpush1.bf16.xpose.msra.mxu0 0
        %1287 = vmatprep.subr.bf16.mxu0 0
        %1288 = vmatpush1.bf16.xpose.msra.mxu0 0
        %1289 = vmatprep.subr.bf16.mxu0 0
        %1290 = vmatpush1.bf16.xpose.msra.mxu0 0
        %1291 = vmatprep.subr.bf16.mxu0 0
        %1292 = vmatpush1.bf16.xpose.msra.mxu0 0
        %1293 = vmatprep.subr.bf16.mxu0 0
        %1294 = vmatpush1.bf16.xpose.msra.mxu0 0
        %1295 = vmatprep.subr.bf16.mxu0 0
        %1296 = vmatpush1.bf16.xpose.msra.mxu0 0
        %1297 = vmatprep.subr.bf16.mxu0 0
        %1298 = vmatpush1.bf16.xpose.msra.mxu0 0
        %1299 = vmatprep.subr.bf16.mxu0 0
        %1300 = vmatpush1.bf16.xpose.msra.mxu0 0
        %1301 = vmatprep.subr.bf16.mxu0 0
        %1302 = vmatpush1.bf16.xpose.msra.mxu0 0
        %1303 = vmatprep.subr.bf16.mxu0 0
        %1304 = vmatpush1.bf16.xpose.msra.mxu0 0
        %1305 = vmatprep.subr.bf16.mxu0 0
        %1306 = vmatpush1.bf16.xpose.msra.mxu0 0
        %1307 = vmatprep.subr.bf16.mxu0 0
        %1308 = vmatpush1.bf16.xpose.msra.mxu0 0
        %1309 = vmatprep.mubr.bf16.mxu0 0
        %1310 = vmatmul.mubr.bf16.gmra.mrb[0].mxu0 %v1266
        %v1311 = vpop.f32.mrb[0].mxu0
        %v1312 = vadd.f32 0.0, %v1311
        %v1313 = vpop.f32.mrb[0].mxu0
        %v1314 = vpop.f32.mrb[0].mxu0
        %v1315 = vadd.f32 0.0, %v1314
        %v1316 = vpop.f32.mrb[0].mxu0
        %1317 = vmatprep.mubr.bf16.mxu0 0
        %1318 = vmatmul.mubr.bf16.gmra.mrb[0].mxu0 %v1269
        %v1319 = vpop.f32.mrb[0].mxu0
        %v1320 = vadd.f32 0.0, %v1319
        %v1321 = vpop.f32.mrb[0].mxu0
        %v1322 = vpop.f32.mrb[0].mxu0
        %v1323 = vpop.f32.mrb[0].mxu0
        %1324 = vdwg.mxu0
        %v1325 = vsel %vm1153, %v1312, -inf
        %1326 = vmax.xlane.f32.xlu0 %v1325
        %v1327 = vpop.xlane.xlu0 %1326
        %v1328 = vsel %vm1153, %v1315, -inf
        %1329 = vmax.xlane.f32.xlu0 %v1328
        %v1330 = vpop.xlane.xlu0 %1329
        %v1331 = vsel %vm1160, %v1320, -inf
        %1332 = vmax.xlane.f32.xlu0 %v1331
        %v1333 = vpop.xlane.xlu0 %1332
        %v1334 = vsub.f32 %v1312, %v1327
        %v1335 = vsub.f32 %v1315, %v1330
        %v1336 = vsub.f32 %v1320, %v1333
        %v1337 = vmul.f32 %v1334, 1.442695
        %v1338 = vpow.pop %v1337
        %v1339 = vmul.f32 %v1335, 1.442695
        %v1340 = vpow.pop %v1339
        %v1341 = vmul.f32 %v1336, 1.442695
        %v1342 = vpow.pop %v1341
        %v1343 = vsel %vm1153, %v1338, 0.0
        %1344 = vadd.xlane.f32.xlu0 %v1343
        %v1345 = vpop.xlane.xlu0 %1344
        %v1346 = vsel %vm1153, %v1340, 0.0
        %1347 = vadd.xlane.f32.xlu0 %v1346
        %v1348 = vpop.xlane.xlu0 %1347
        %v1349 = vsel %vm1160, %v1342, 0.0
        %1350 = vadd.xlane.f32.xlu0 %v1349
        %v1351 = vpop.xlane.xlu0 %1350
        %v1352 = vrcp.pop %v1345
        %v1353 = vmul.f32 %v1338, %v1352
        %v1354 = vrcp.pop %v1348
        %v1355 = vmul.f32 %v1340, %v1354
        %v1356 = vrcp.pop %v1351
        %v1357 = vmul.f32 %v1342, %v1356
        %v1358 = vpack.c.bf16 %v1355, %v1353
        %v1359 = vpack.c.bf16 %v1357, %v1357
        %1360 = vrot.lane.b32.xlu0 %v1084, 56
        %v1361 = vpop.permute.xlu0 %1360
        %1362 = vrot.lane.b32.xlu0 %v1085, 56
        %v1363 = vpop.permute.xlu0 %1362
        %v1366 = vsel %vm1153, %v1358, 0
        %v1369 = vsel %vm1153, %v1359, 0
        %v1372 = vand.u32 %v1363, %v1203
        %1374 = vmatprep.subr.bf16.mxu0 0
        %1375 = vmatpush1.bf16.msra.mxu0 %v1361
        %1376 = vmatprep.subr.bf16.mxu0 0
        %1377 = vmatpush1.bf16.msra.mxu0 %v1372
        %1378 = vmatprep.subr.bf16.mxu0 0
        %1379 = vmatpush1.bf16.msra.mxu0 0
        %1380 = vmatprep.subr.bf16.mxu0 0
        %1381 = vmatpush1.bf16.msra.mxu0 0
        %1382 = vmatprep.subr.bf16.mxu0 0
        %1383 = vmatpush1.bf16.msra.mxu0 0
        %1384 = vmatprep.subr.bf16.mxu0 0
        %1385 = vmatpush1.bf16.msra.mxu0 0
        %1386 = vmatprep.subr.bf16.mxu0 0
        %1387 = vmatpush1.bf16.msra.mxu0 0
        %1388 = vmatprep.subr.bf16.mxu0 0
        %1389 = vmatpush1.bf16.msra.mxu0 0
        %1390 = vmatprep.subr.bf16.mxu0 0
        %1391 = vmatpush1.bf16.msra.mxu0 0
        %1392 = vmatprep.subr.bf16.mxu0 0
        %1393 = vmatpush1.bf16.msra.mxu0 0
        %1394 = vmatprep.subr.bf16.mxu0 0
        %1395 = vmatpush1.bf16.msra.mxu0 0
        %1396 = vmatprep.subr.bf16.mxu0 0
        %1397 = vmatpush1.bf16.msra.mxu0 0
        %1398 = vmatprep.subr.bf16.mxu0 0
        %1399 = vmatpush1.bf16.msra.mxu0 0
        %1400 = vmatprep.subr.bf16.mxu0 0
        %1401 = vmatpush1.bf16.msra.mxu0 0
        %1402 = vmatprep.subr.bf16.mxu0 0
        %1403 = vmatpush1.bf16.msra.mxu0 0
        %1404 = vmatprep.subr.bf16.mxu0 0
        %1405 = vmatpush1.bf16.msra.mxu0 0
        %1406 = vmatprep.mubr.bf16.mxu0 0
        %1407 = vmatmul.mubr.bf16.gmra.mrb[0].mxu0 %v1366
        %v1408 = vpop.f32.mrb[0].mxu0
        %v1409 = vadd.f32 0.0, %v1408
        %v1410 = vpop.f32.mrb[0].mxu0
        %v1411 = vpop.f32.mrb[0].mxu0
        %v1412 = vadd.f32 0.0, %v1411
        %v1413 = vpop.f32.mrb[0].mxu0
        %1414 = vmatprep.mubr.bf16.mxu0 0
        %1415 = vmatmul.mubr.bf16.gmra.mrb[0].mxu0 %v1369
        %v1416 = vpop.f32.mrb[0].mxu0
        %v1417 = vadd.f32 0.0, %v1416
        %v1418 = vpop.f32.mrb[0].mxu0
        %v1419 = vpop.f32.mrb[0].mxu0
        %v1420 = vpop.f32.mrb[0].mxu0
        %1421 = vdwg.mxu0
        %1422 = vrot.lane.b32.xlu0 %v1082, 112
        %v1423 = vpop.permute.xlu0 %1422
        %1424 = vrot.lane.b32.xlu0 %v1083, 112
        %v1425 = vpop.permute.xlu0 %1424
        %1426 = vrot.lane.b32.xlu0 %v1084, 80
        %v1427 = vpop.permute.xlu0 %1426
        %1428 = vrot.lane.b32.xlu0 %v1085, 80
        %v1429 = vpop.permute.xlu0 %1428
        %v1431 = vsel %vm1092, %v1423, 0
        %v1434 = vsel %vm1092, %v1425, 0
        %v1437 = vsel %vm1092, %v1427, 0
        %v1440 = vsel %vm1092, %v1429, 0
        %1442 = vmatprep.subr.bf16.mxu0 0
        %1443 = vmatpush1.bf16.xpose.msra.mxu0 %v1437
        %1444 = vmatprep.subr.bf16.mxu0 0
        %1445 = vmatpush1.bf16.xpose.msra.mxu0 %v1440
        %1446 = vmatprep.subr.bf16.mxu0 0
        %1447 = vmatpush1.bf16.xpose.msra.mxu0 0
        %1448 = vmatprep.subr.bf16.mxu0 0
        %1449 = vmatpush1.bf16.xpose.msra.mxu0 0
        %1450 = vmatprep.subr.bf16.mxu0 0
        %1451 = vmatpush1.bf16.xpose.msra.mxu0 0
        %1452 = vmatprep.subr.bf16.mxu0 0
        %1453 = vmatpush1.bf16.xpose.msra.mxu0 0
        %1454 = vmatprep.subr.bf16.mxu0 0
        %1455 = vmatpush1.bf16.xpose.msra.mxu0 0
        %1456 = vmatprep.subr.bf16.mxu0 0
        %1457 = vmatpush1.bf16.xpose.msra.mxu0 0
        %1458 = vmatprep.subr.bf16.mxu0 0
        %1459 = vmatpush1.bf16.xpose.msra.mxu0 0
        %1460 = vmatprep.subr.bf16.mxu0 0
        %1461 = vmatpush1.bf16.xpose.msra.mxu0 0
        %1462 = vmatprep.subr.bf16.mxu0 0
        %1463 = vmatpush1.bf16.xpose.msra.mxu0 0
        %1464 = vmatprep.subr.bf16.mxu0 0
        %1465 = vmatpush1.bf16.xpose.msra.mxu0 0
        %1466 = vmatprep.subr.bf16.mxu0 0
        %1467 = vmatpush1.bf16.xpose.msra.mxu0 0
        %1468 = vmatprep.subr.bf16.mxu0 0
        %1469 = vmatpush1.bf16.xpose.msra.mxu0 0
        %1470 = vmatprep.subr.bf16.mxu0 0
        %1471 = vmatpush1.bf16.xpose.msra.mxu0 0
        %1472 = vmatprep.subr.bf16.mxu0 0
        %1473 = vmatpush1.bf16.xpose.msra.mxu0 0
        %1474 = vmatprep.mubr.bf16.mxu0 0
        %1475 = vmatmul.mubr.bf16.gmra.mrb[0].mxu0 %v1431
        %v1476 = vpop.f32.mrb[0].mxu0
        %v1477 = vadd.f32 0.0, %v1476
        %v1478 = vpop.f32.mrb[0].mxu0
        %v1479 = vpop.f32.mrb[0].mxu0
        %v1480 = vadd.f32 0.0, %v1479
        %v1481 = vpop.f32.mrb[0].mxu0
        %1482 = vmatprep.mubr.bf16.mxu0 0
        %1483 = vmatmul.mubr.bf16.gmra.mrb[0].mxu0 %v1434
        %v1484 = vpop.f32.mrb[0].mxu0
        %v1485 = vadd.f32 0.0, %v1484
        %v1486 = vpop.f32.mrb[0].mxu0
        %v1487 = vpop.f32.mrb[0].mxu0
        %v1488 = vpop.f32.mrb[0].mxu0
        %1489 = vdwg.mxu0
        %v1490 = vsel %vm1153, %v1477, -inf
        %1491 = vmax.xlane.f32.xlu0 %v1490
        %v1492 = vpop.xlane.xlu0 %1491
        %v1493 = vsel %vm1153, %v1480, -inf
        %1494 = vmax.xlane.f32.xlu0 %v1493
        %v1495 = vpop.xlane.xlu0 %1494
        %v1496 = vsel %vm1160, %v1485, -inf
        %1497 = vmax.xlane.f32.xlu0 %v1496
        %v1498 = vpop.xlane.xlu0 %1497
        %v1499 = vsub.f32 %v1477, %v1492
        %v1500 = vsub.f32 %v1480, %v1495
        %v1501 = vsub.f32 %v1485, %v1498
        %v1502 = vmul.f32 %v1499, 1.442695
        %v1503 = vpow.pop %v1502
        %v1504 = vmul.f32 %v1500, 1.442695
        %v1505 = vpow.pop %v1504
        %v1506 = vmul.f32 %v1501, 1.442695
        %v1507 = vpow.pop %v1506
        %v1508 = vsel %vm1153, %v1503, 0.0
        %1509 = vadd.xlane.f32.xlu0 %v1508
        %v1510 = vpop.xlane.xlu0 %1509
        %v1511 = vsel %vm1153, %v1505, 0.0
        %1512 = vadd.xlane.f32.xlu0 %v1511
        %v1513 = vpop.xlane.xlu0 %1512
        %v1514 = vsel %vm1160, %v1507, 0.0
        %1515 = vadd.xlane.f32.xlu0 %v1514
        %v1516 = vpop.xlane.xlu0 %1515
        %v1517 = vrcp.pop %v1510
        %v1518 = vmul.f32 %v1503, %v1517
        %v1519 = vrcp.pop %v1513
        %v1520 = vmul.f32 %v1505, %v1519
        %v1521 = vrcp.pop %v1516
        %v1522 = vmul.f32 %v1507, %v1521
        %v1523 = vpack.c.bf16 %v1520, %v1518
        %v1524 = vpack.c.bf16 %v1522, %v1522
        %1525 = vrot.lane.b32.xlu0 %v1084, 48
        %v1526 = vpop.permute.xlu0 %1525
        %1527 = vrot.lane.b32.xlu0 %v1085, 48
        %v1528 = vpop.permute.xlu0 %1527
        %v1531 = vsel %vm1153, %v1523, 0
        %v1534 = vsel %vm1153, %v1524, 0
        %v1537 = vand.u32 %v1528, %v1203
        %1539 = vmatprep.subr.bf16.mxu0 0
        %1540 = vmatpush1.bf16.msra.mxu0 %v1526
        %1541 = vmatprep.subr.bf16.mxu0 0
        %1542 = vmatpush1.bf16.msra.mxu0 %v1537
        %1543 = vmatprep.subr.bf16.mxu0 0
        %1544 = vmatpush1.bf16.msra.mxu0 0
        %1545 = vmatprep.subr.bf16.mxu0 0
        %1546 = vmatpush1.bf16.msra.mxu0 0
        %1547 = vmatprep.subr.bf16.mxu0 0
        %1548 = vmatpush1.bf16.msra.mxu0 0
        %1549 = vmatprep.subr.bf16.mxu0 0
        %1550 = vmatpush1.bf16.msra.mxu0 0
        %1551 = vmatprep.subr.bf16.mxu0 0
        %1552 = vmatpush1.bf16.msra.mxu0 0
        %1553 = vmatprep.subr.bf16.mxu0 0
        %1554 = vmatpush1.bf16.msra.mxu0 0
        %1555 = vmatprep.subr.bf16.mxu0 0
        %1556 = vmatpush1.bf16.msra.mxu0 0
        %1557 = vmatprep.subr.bf16.mxu0 0
        %1558 = vmatpush1.bf16.msra.mxu0 0
        %1559 = vmatprep.subr.bf16.mxu0 0
        %1560 = vmatpush1.bf16.msra.mxu0 0
        %1561 = vmatprep.subr.bf16.mxu0 0
        %1562 = vmatpush1.bf16.msra.mxu0 0
        %1563 = vmatprep.subr.bf16.mxu0 0
        %1564 = vmatpush1.bf16.msra.mxu0 0
        %1565 = vmatprep.subr.bf16.mxu0 0
        %1566 = vmatpush1.bf16.msra.mxu0 0
        %1567 = vmatprep.subr.bf16.mxu0 0
        %1568 = vmatpush1.bf16.msra.mxu0 0
        %1569 = vmatprep.subr.bf16.mxu0 0
        %1570 = vmatpush1.bf16.msra.mxu0 0
        %1571 = vmatprep.mubr.bf16.mxu0 0
        %1572 = vmatmul.mubr.bf16.gmra.mrb[0].mxu0 %v1531
        %v1573 = vpop.f32.mrb[0].mxu0
        %v1574 = vadd.f32 0.0, %v1573
        %v1575 = vpop.f32.mrb[0].mxu0
        %v1576 = vpop.f32.mrb[0].mxu0
        %v1577 = vadd.f32 0.0, %v1576
        %v1578 = vpop.f32.mrb[0].mxu0
        %1579 = vmatprep.mubr.bf16.mxu0 0
        %1580 = vmatmul.mubr.bf16.gmra.mrb[0].mxu0 %v1534
        %v1581 = vpop.f32.mrb[0].mxu0
        %v1582 = vadd.f32 0.0, %v1581
        %v1583 = vpop.f32.mrb[0].mxu0
        %v1584 = vpop.f32.mrb[0].mxu0
        %v1585 = vpop.f32.mrb[0].mxu0
        %1586 = vdwg.mxu0
        %1587 = vrot.lane.b32.xlu0 %v1082, 104
        %v1588 = vpop.permute.xlu0 %1587
        %1589 = vrot.lane.b32.xlu0 %v1083, 104
        %v1590 = vpop.permute.xlu0 %1589
        %1591 = vrot.lane.b32.xlu0 %v1084, 72
        %v1592 = vpop.permute.xlu0 %1591
        %1593 = vrot.lane.b32.xlu0 %v1085, 72
        %v1594 = vpop.permute.xlu0 %1593
        %v1596 = vsel %vm1092, %v1588, 0
        %v1599 = vsel %vm1092, %v1590, 0
        %v1602 = vsel %vm1092, %v1592, 0
        %v1605 = vsel %vm1092, %v1594, 0
        %1607 = vmatprep.subr.bf16.mxu0 0
        %1608 = vmatpush1.bf16.xpose.msra.mxu0 %v1602
        %1609 = vmatprep.subr.bf16.mxu0 0
        %1610 = vmatpush1.bf16.xpose.msra.mxu0 %v1605
        %1611 = vmatprep.subr.bf16.mxu0 0
        %1612 = vmatpush1.bf16.xpose.msra.mxu0 0
        %1613 = vmatprep.subr.bf16.mxu0 0
        %1614 = vmatpush1.bf16.xpose.msra.mxu0 0
        %1615 = vmatprep.subr.bf16.mxu0 0
        %1616 = vmatpush1.bf16.xpose.msra.mxu0 0
        %1617 = vmatprep.subr.bf16.mxu0 0
        %1618 = vmatpush1.bf16.xpose.msra.mxu0 0
        %1619 = vmatprep.subr.bf16.mxu0 0
        %1620 = vmatpush1.bf16.xpose.msra.mxu0 0
        %1621 = vmatprep.subr.bf16.mxu0 0
        %1622 = vmatpush1.bf16.xpose.msra.mxu0 0
        %1623 = vmatprep.subr.bf16.mxu0 0
        %1624 = vmatpush1.bf16.xpose.msra.mxu0 0
        %1625 = vmatprep.subr.bf16.mxu0 0
        %1626 = vmatpush1.bf16.xpose.msra.mxu0 0
        %1627 = vmatprep.subr.bf16.mxu0 0
        %1628 = vmatpush1.bf16.xpose.msra.mxu0 0
        %1629 = vmatprep.subr.bf16.mxu0 0
        %1630 = vmatpush1.bf16.xpose.msra.mxu0 0
        %1631 = vmatprep.subr.bf16.mxu0 0
        %1632 = vmatpush1.bf16.xpose.msra.mxu0 0
        %1633 = vmatprep.subr.bf16.mxu0 0
        %1634 = vmatpush1.bf16.xpose.msra.mxu0 0
        %1635 = vmatprep.subr.bf16.mxu0 0
        %1636 = vmatpush1.bf16.xpose.msra.mxu0 0
        %1637 = vmatprep.subr.bf16.mxu0 0
        %1638 = vmatpush1.bf16.xpose.msra.mxu0 0
        %1639 = vmatprep.mubr.bf16.mxu0 0
        %1640 = vmatmul.mubr.bf16.gmra.mrb[0].mxu0 %v1596
        %v1641 = vpop.f32.mrb[0].mxu0
        %v1642 = vadd.f32 0.0, %v1641
        %v1643 = vpop.f32.mrb[0].mxu0
        %v1644 = vpop.f32.mrb[0].mxu0
        %v1645 = vadd.f32 0.0, %v1644
        %v1646 = vpop.f32.mrb[0].mxu0
        %1647 = vmatprep.mubr.bf16.mxu0 0
        %1648 = vmatmul.mubr.bf16.gmra.mrb[0].mxu0 %v1599
        %v1649 = vpop.f32.mrb[0].mxu0
        %v1650 = vadd.f32 0.0, %v1649
        %v1651 = vpop.f32.mrb[0].mxu0
        %v1652 = vpop.f32.mrb[0].mxu0
        %v1653 = vpop.f32.mrb[0].mxu0
        %1654 = vdwg.mxu0
        %v1655 = vsel %vm1153, %v1642, -inf
        %1656 = vmax.xlane.f32.xlu0 %v1655
        %v1657 = vpop.xlane.xlu0 %1656
        %v1658 = vsel %vm1153, %v1645, -inf
        %1659 = vmax.xlane.f32.xlu0 %v1658
        %v1660 = vpop.xlane.xlu0 %1659
        %v1661 = vsel %vm1160, %v1650, -inf
        %1662 = vmax.xlane.f32.xlu0 %v1661
        %v1663 = vpop.xlane.xlu0 %1662
        %v1664 = vsub.f32 %v1642, %v1657
        %v1665 = vsub.f32 %v1645, %v1660
        %v1666 = vsub.f32 %v1650, %v1663
        %v1667 = vmul.f32 %v1664, 1.442695
        %v1668 = vpow.pop %v1667
        %v1669 = vmul.f32 %v1665, 1.442695
        %v1670 = vpow.pop %v1669
        %v1671 = vmul.f32 %v1666, 1.442695
        %v1672 = vpow.pop %v1671
        %v1673 = vsel %vm1153, %v1668, 0.0
        %1674 = vadd.xlane.f32.xlu0 %v1673
        %v1675 = vpop.xlane.xlu0 %1674
        %v1676 = vsel %vm1153, %v1670, 0.0
        %1677 = vadd.xlane.f32.xlu0 %v1676
        %v1678 = vpop.xlane.xlu0 %1677
        %v1679 = vsel %vm1160, %v1672, 0.0
        %1680 = vadd.xlane.f32.xlu0 %v1679
        %v1681 = vpop.xlane.xlu0 %1680
        %v1682 = vrcp.pop %v1675
        %v1683 = vmul.f32 %v1668, %v1682
        %v1684 = vrcp.pop %v1678
        %v1685 = vmul.f32 %v1670, %v1684
        %v1686 = vrcp.pop %v1681
        %v1687 = vmul.f32 %v1672, %v1686
        %v1688 = vpack.c.bf16 %v1685, %v1683
        %v1689 = vpack.c.bf16 %v1687, %v1687
        %1690 = vrot.lane.b32.xlu0 %v1084, 40
        %v1691 = vpop.permute.xlu0 %1690
        %1692 = vrot.lane.b32.xlu0 %v1085, 40
        %v1693 = vpop.permute.xlu0 %1692
        %v1696 = vsel %vm1153, %v1688, 0
        %v1699 = vsel %vm1153, %v1689, 0
        %v1702 = vand.u32 %v1693, %v1203
        %1704 = vmatprep.subr.bf16.mxu0 0
        %1705 = vmatpush1.bf16.msra.mxu0 %v1691
        %1706 = vmatprep.subr.bf16.mxu0 0
        %1707 = vmatpush1.bf16.msra.mxu0 %v1702
        %1708 = vmatprep.subr.bf16.mxu0 0
        %1709 = vmatpush1.bf16.msra.mxu0 0
        %1710 = vmatprep.subr.bf16.mxu0 0
        %1711 = vmatpush1.bf16.msra.mxu0 0
        %1712 = vmatprep.subr.bf16.mxu0 0
        %1713 = vmatpush1.bf16.msra.mxu0 0
        %1714 = vmatprep.subr.bf16.mxu0 0
        %1715 = vmatpush1.bf16.msra.mxu0 0
        %1716 = vmatprep.subr.bf16.mxu0 0
        %1717 = vmatpush1.bf16.msra.mxu0 0
        %1718 = vmatprep.subr.bf16.mxu0 0
        %1719 = vmatpush1.bf16.msra.mxu0 0
        %1720 = vmatprep.subr.bf16.mxu0 0
        %1721 = vmatpush1.bf16.msra.mxu0 0
        %1722 = vmatprep.subr.bf16.mxu0 0
        %1723 = vmatpush1.bf16.msra.mxu0 0
        %1724 = vmatprep.subr.bf16.mxu0 0
        %1725 = vmatpush1.bf16.msra.mxu0 0
        %1726 = vmatprep.subr.bf16.mxu0 0
        %1727 = vmatpush1.bf16.msra.mxu0 0
        %1728 = vmatprep.subr.bf16.mxu0 0
        %1729 = vmatpush1.bf16.msra.mxu0 0
        %1730 = vmatprep.subr.bf16.mxu0 0
        %1731 = vmatpush1.bf16.msra.mxu0 0
        %1732 = vmatprep.subr.bf16.mxu0 0
        %1733 = vmatpush1.bf16.msra.mxu0 0
        %1734 = vmatprep.subr.bf16.mxu0 0
        %1735 = vmatpush1.bf16.msra.mxu0 0
        %1736 = vmatprep.mubr.bf16.mxu0 0
        %1737 = vmatmul.mubr.bf16.gmra.mrb[0].mxu0 %v1696
        %v1738 = vpop.f32.mrb[0].mxu0
        %v1739 = vadd.f32 0.0, %v1738
        %v1740 = vpop.f32.mrb[0].mxu0
        %v1741 = vpop.f32.mrb[0].mxu0
        %v1742 = vadd.f32 0.0, %v1741
        %v1743 = vpop.f32.mrb[0].mxu0
        %1744 = vmatprep.mubr.bf16.mxu0 0
        %1745 = vmatmul.mubr.bf16.gmra.mrb[0].mxu0 %v1699
        %v1746 = vpop.f32.mrb[0].mxu0
        %v1747 = vadd.f32 0.0, %v1746
        %v1748 = vpop.f32.mrb[0].mxu0
        %v1749 = vpop.f32.mrb[0].mxu0
        %v1750 = vpop.f32.mrb[0].mxu0
        %1751 = vdwg.mxu0
        %1755 = vrot.lane.b32.xlu0 %v1409, 8
        %v1756 = vpop.permute.xlu0 %1755
        %1757 = vrot.lane.b32.xlu0 %v1412, 8
        %v1758 = vpop.permute.xlu0 %1757
        %1759 = vrot.lane.b32.xlu0 %v1417, 8
        %v1760 = vpop.permute.xlu0 %1759
        %1767 = vrot.lane.b32.xlu0 %v1574, 16
        %v1768 = vpop.permute.xlu0 %1767
        %1769 = vrot.lane.b32.xlu0 %v1577, 16
        %v1770 = vpop.permute.xlu0 %1769
        %1771 = vrot.lane.b32.xlu0 %v1582, 16
        %v1772 = vpop.permute.xlu0 %1771
        %1779 = vrot.lane.b32.xlu0 %v1739, 24
        %v1780 = vpop.permute.xlu0 %1779
        %1781 = vrot.lane.b32.xlu0 %v1742, 24
        %v1782 = vpop.permute.xlu0 %1781
        %1783 = vrot.lane.b32.xlu0 %v1747, 24
        %v1784 = vpop.permute.xlu0 %1783
        %v1788 = vsel %vm1092, %v1242, %v1756
        %v1789 = vsel %vm1092, %v1245, %v1758
        %v1790 = vsel %vm1092, %v1250, %v1760
        %vm1791 = vcmask 130048
        %v1792 = vsel %vm1791, %v1788, %v1768
        %v1793 = vsel %vm1791, %v1789, %v1770
        %v1794 = vsel %vm1791, %v1790, %v1772
        %vm1795 = vcmask 195584
        %v1796 = vsel %vm1795, %v1792, %v1780
        %v1797 = vsel %vm1795, %v1793, %v1782
        %v1798 = vsel %vm1795, %v1794, %v1784
        %v1799 = vld [vmem:[%s795] sm:$0xf]
        %v1800 = vld [vmem:[%s795 + $0x4] sm:$0xf]
        %v1801 = vld [vmem:[%s795 + $0x8] sm:$0xf]
        %v1802 = vld [vmem:[%s795 + $0xc] sm:$0xf]
        %v1803 = vpack.c.bf16 %v1797, %v1796
        %v1804 = vpack.c.bf16 %v1798, %v1798
        %v1805 = vld [vmem:[%s798] sm:$0x1]
        %v1807 = vlaneseq
        %v1808 = vshrl.u32 %v1807, 7
        %v1809 = vsub.s32 0, %v1808
        %v1810 = vrot.slane %v1805, %v1809
        %v1816 = vunpack.c.l.b16 %v1799
        %v1817 = vunpack.c.l.b16 %v1800
        %v1818 = vunpack.c.l.b16 %v1801
        %v1819 = vunpack.c.l.b16 %v1802
        %v1820 = vpack.c.b16 %v1817, %v1816
        %v1821 = vpack.c.b16 %v1819, %v1818
        %v1825 = vsel %vm940, %v1803, 0
        %v1828 = vsel %vm940, %v1804, 0
        %1830 = vmatprep.subr.bf16.mxu0 0
        %1831 = vmatpush1.bf16.msra.mxu0 %v1820
        %1832 = vmatprep.subr.bf16.mxu0 0
        %1833 = vmatpush1.bf16.msra.mxu0 %v1821
        %1834 = vmatprep.subr.bf16.mxu0 0
        %1835 = vmatpush1.bf16.msra.mxu0 0
        %1836 = vmatprep.subr.bf16.mxu0 0
        %1837 = vmatpush1.bf16.msra.mxu0 0
        %1838 = vmatprep.subr.bf16.mxu0 0
        %1839 = vmatpush1.bf16.msra.mxu0 0
        %1840 = vmatprep.subr.bf16.mxu0 0
        %1841 = vmatpush1.bf16.msra.mxu0 0
        %1842 = vmatprep.subr.bf16.mxu0 0
        %1843 = vmatpush1.bf16.msra.mxu0 0
        %1844 = vmatprep.subr.bf16.mxu0 0
        %1845 = vmatpush1.bf16.msra.mxu0 0
        %1846 = vmatprep.subr.bf16.mxu0 0
        %1847 = vmatpush1.bf16.msra.mxu0 0
        %1848 = vmatprep.subr.bf16.mxu0 0
        %1849 = vmatpush1.bf16.msra.mxu0 0
        %1850 = vmatprep.subr.bf16.mxu0 0
        %1851 = vmatpush1.bf16.msra.mxu0 0
        %1852 = vmatprep.subr.bf16.mxu0 0
        %1853 = vmatpush1.bf16.msra.mxu0 0
        %1854 = vmatprep.subr.bf16.mxu0 0
        %1855 = vmatpush1.bf16.msra.mxu0 0
        %1856 = vmatprep.subr.bf16.mxu0 0
        %1857 = vmatpush1.bf16.msra.mxu0 0
        %1858 = vmatprep.subr.bf16.mxu0 0
        %1859 = vmatpush1.bf16.msra.mxu0 0
        %1860 = vmatprep.subr.bf16.mxu0 0
        %1861 = vmatpush1.bf16.msra.mxu0 0
        %1862 = vmatprep.mubr.bf16.mxu0 0
        %1863 = vmatmul.mubr.bf16.gmra.mrb[0].mxu0 %v1825
        %v1864 = vpop.f32.mrb[0].mxu0
        %v1865 = vadd.f32 %v1810, %v1864
        %v1866 = vpop.f32.mrb[0].mxu0
        %v1867 = vpop.f32.mrb[0].mxu0
        %v1868 = vadd.f32 %v1810, %v1867
        %v1869 = vpop.f32.mrb[0].mxu0
        %1870 = vmatprep.mubr.bf16.mxu0 0
        %1871 = vmatmul.mubr.bf16.gmra.mrb[0].mxu0 %v1828
        %v1872 = vpop.f32.mrb[0].mxu0
        %v1873 = vadd.f32 %v1810, %v1872
        %v1874 = vpop.f32.mrb[0].mxu0
        %v1875 = vpop.f32.mrb[0].mxu0
        %v1876 = vpop.f32.mrb[0].mxu0
        %1877 = vdwg.mxu0
        %v1878 = vld [vmem:[%s801] sm:$0x1]
        %v1880 = vlaneseq
        %v1881 = vshrl.u32 %v1880, 7
        %v1882 = vsub.s32 0, %v1881
        %v1883 = vrot.slane %v1878, %v1882
        %v1885 = vmul.f32 %v1865, %v1883
        %v1886 = vmul.f32 %v1868, %v1883
        %v1887 = vmul.f32 %v1873, %v1883
        %v1888 = vadd.f32 %v935, %v1885
        %v1889 = vadd.f32 %v936, %v1886
        %v1890 = vadd.f32 %v937, %v1887
        %v1891 = vld [vmem:[%s810] sm:$0x1]
        %v1892 = vld [vmem:[%s813] sm:$0x1]
        %v1893 = vsel %vm940, %v1888, 0.0
        %1894 = vadd.xlane.f32.xlu0 %v1893
        %v1895 = vpop.xlane.xlu0 %1894
        %v1896 = vsel %vm940, %v1889, 0.0
        %1897 = vadd.xlane.f32.xlu0 %v1896
        %v1898 = vpop.xlane.xlu0 %1897
        %v1899 = vsel %vm947, %v1890, 0.0
        %1900 = vadd.xlane.f32.xlu0 %v1899
        %v1901 = vpop.xlane.xlu0 %1900
        %v1902 = vmul.f32 %v1895, %v951
        %v1903 = vmul.f32 %v1898, %v951
        %v1904 = vmul.f32 %v1901, %v951
        %v1905 = vsub.f32 %v1888, %v1902
        %v1906 = vsub.f32 %v1889, %v1903
        %v1907 = vsub.f32 %v1890, %v1904
        %v1908 = vmul.f32 %v1905, %v1905
        %v1909 = vmul.f32 %v1906, %v1906
        %v1910 = vmul.f32 %v1907, %v1907
        %v1911 = vsel %vm940, %v1908, 0.0
        %1912 = vadd.xlane.f32.xlu0 %v1911
        %v1913 = vpop.xlane.xlu0 %1912
        %v1914 = vsel %vm940, %v1909, 0.0
        %1915 = vadd.xlane.f32.xlu0 %v1914
        %v1916 = vpop.xlane.xlu0 %1915
        %v1917 = vsel %vm947, %v1910, 0.0
        %1918 = vadd.xlane.f32.xlu0 %v1917
        %v1919 = vpop.xlane.xlu0 %1918
        %v1920 = vmul.f32 %v1913, %v951
        %v1921 = vmul.f32 %v1916, %v951
        %v1922 = vmul.f32 %v1919, %v951
        %v1923 = vadd.f32 %v1920, 1e-06
        %v1924 = vadd.f32 %v1921, 1e-06
        %v1925 = vadd.f32 %v1922, 1e-06
        %v1926 = vrsqrt.pop %v1923
        %v1927 = vrsqrt.pop %v1924
        %v1928 = vrsqrt.pop %v1925
        %v1929 = vmul.f32 %v1905, %v1926
        %v1930 = vmul.f32 %v1906, %v1927
        %v1931 = vmul.f32 %v1907, %v1928
        %v1933 = vlaneseq
        %v1934 = vshrl.u32 %v1933, 7
        %v1935 = vsub.s32 0, %v1934
        %v1936 = vrot.slane %v1891, %v1935
        %v1938 = vmul.f32 %v1929, %v1936
        %v1939 = vmul.f32 %v1930, %v1936
        %v1940 = vmul.f32 %v1931, %v1936
        %v1942 = vlaneseq
        %v1943 = vshrl.u32 %v1942, 7
        %v1944 = vsub.s32 0, %v1943
        %v1945 = vrot.slane %v1892, %v1944
        %v1947 = vadd.f32 %v1938, %v1945
        %v1948 = vadd.f32 %v1939, %v1945
        %v1949 = vadd.f32 %v1940, %v1945
        %v1950 = vld [vmem:[%s818] sm:$0xf]
        %v1951 = vld [vmem:[%s818 + $0x4] sm:$0xf]
        %v1952 = vld [vmem:[%s818 + $0x8] sm:$0xf]
        %v1953 = vld [vmem:[%s818 + $0xc] sm:$0xf]
        %v1954 = vpack.c.bf16 %v1948, %v1947
        %v1955 = vpack.c.bf16 %v1949, %v1949
        %v1956 = vld [vmem:[%s821] sm:$0x1]
        %v1958 = vlaneseq
        %v1959 = vshrl.u32 %v1958, 7
        %v1960 = vsub.s32 0, %v1959
        %v1961 = vrot.slane %v1956, %v1960
        %v1967 = vunpack.c.l.b16 %v1950
        %v1968 = vunpack.c.l.b16 %v1951
        %v1969 = vunpack.c.l.b16 %v1952
        %v1970 = vunpack.c.l.b16 %v1953
        %v1971 = vpack.c.b16 %v1968, %v1967
        %v1972 = vpack.c.b16 %v1970, %v1969
        %v1976 = vsel %vm940, %v1954, 0
        %v1979 = vsel %vm940, %v1955, 0
        %1981 = vmatprep.subr.bf16.mxu0 0
        %1982 = vmatpush1.bf16.msra.mxu0 %v1971
        %1983 = vmatprep.subr.bf16.mxu0 0
        %1984 = vmatpush1.bf16.msra.mxu0 %v1972
        %1985 = vmatprep.subr.bf16.mxu0 0
        %1986 = vmatpush1.bf16.msra.mxu0 0
        %1987 = vmatprep.subr.bf16.mxu0 0
        %1988 = vmatpush1.bf16.msra.mxu0 0
        %1989 = vmatprep.subr.bf16.mxu0 0
        %1990 = vmatpush1.bf16.msra.mxu0 0
        %1991 = vmatprep.subr.bf16.mxu0 0
        %1992 = vmatpush1.bf16.msra.mxu0 0
        %1993 = vmatprep.subr.bf16.mxu0 0
        %1994 = vmatpush1.bf16.msra.mxu0 0
        %1995 = vmatprep.subr.bf16.mxu0 0
        %1996 = vmatpush1.bf16.msra.mxu0 0
        %1997 = vmatprep.subr.bf16.mxu0 0
        %1998 = vmatpush1.bf16.msra.mxu0 0
        %1999 = vmatprep.subr.bf16.mxu0 0
        %2000 = vmatpush1.bf16.msra.mxu0 0
        %2001 = vmatprep.subr.bf16.mxu0 0
        %2002 = vmatpush1.bf16.msra.mxu0 0
        %2003 = vmatprep.subr.bf16.mxu0 0
        %2004 = vmatpush1.bf16.msra.mxu0 0
        %2005 = vmatprep.subr.bf16.mxu0 0
        %2006 = vmatpush1.bf16.msra.mxu0 0
        %2007 = vmatprep.subr.bf16.mxu0 0
        %2008 = vmatpush1.bf16.msra.mxu0 0
        %2009 = vmatprep.subr.bf16.mxu0 0
        %2010 = vmatpush1.bf16.msra.mxu0 0
        %2011 = vmatprep.subr.bf16.mxu0 0
        %2012 = vmatpush1.bf16.msra.mxu0 0
        %2013 = vmatprep.mubr.bf16.mxu0 0
        %2014 = vmatmul.mubr.bf16.gmra.mrb[0].mxu0 %v1976
        %v2015 = vpop.f32.mrb[0].mxu0
        %v2016 = vadd.f32 %v1961, %v2015
        %v2017 = vpop.f32.mrb[0].mxu0
        %v2018 = vpop.f32.mrb[0].mxu0
        %v2019 = vadd.f32 %v1961, %v2018
        %v2020 = vpop.f32.mrb[0].mxu0
        %2021 = vmatprep.mubr.bf16.mxu0 0
        %2022 = vmatmul.mubr.bf16.gmra.mrb[0].mxu0 %v1979
        %v2023 = vpop.f32.mrb[0].mxu0
        %v2024 = vadd.f32 %v1961, %v2023
        %v2025 = vpop.f32.mrb[0].mxu0
        %v2026 = vpop.f32.mrb[0].mxu0
        %v2027 = vpop.f32.mrb[0].mxu0
        %2028 = vdwg.mxu0
        %v2029 = vmul.f32 %v2016, 0.5
        %v2030 = vmul.f32 %v2019, 0.5
        %v2031 = vmul.f32 %v2024, 0.5
        %v2032 = vmul.f32 %v2016, 0.70710677
        %v2033 = vmul.f32 %v2019, 0.70710677
        %v2034 = vmul.f32 %v2024, 0.70710677
        %v2035 = verf.f32.pop %v2032
        %v2036 = verf.f32.pop %v2033
        %v2037 = verf.f32.pop %v2034
        %v2038 = vadd.f32 %v2035, 1.0
        %v2039 = vadd.f32 %v2036, 1.0
        %v2040 = vadd.f32 %v2037, 1.0
        %v2041 = vmul.f32 %v2029, %v2038
        %v2042 = vmul.f32 %v2030, %v2039
        %v2043 = vmul.f32 %v2031, %v2040
        %v2044 = vld [vmem:[%s826] sm:$0xf]
        %v2045 = vld [vmem:[%s826 + $0x4] sm:$0xf]
        %v2046 = vld [vmem:[%s826 + $0x8] sm:$0xf]
        %v2047 = vld [vmem:[%s826 + $0xc] sm:$0xf]
        %v2048 = vld [vmem:[%s826 + $0x10] sm:$0xf]
        %v2049 = vld [vmem:[%s826 + $0x14] sm:$0xf]
        %v2050 = vld [vmem:[%s826 + $0x18] sm:$0xf]
        %v2051 = vld [vmem:[%s826 + $0x1c] sm:$0xf]
        %v2052 = vld [vmem:[%s826 + $0x20] sm:$0xf]
        %v2053 = vld [vmem:[%s826 + $0x24] sm:$0xf]
        %v2054 = vld [vmem:[%s826 + $0x28] sm:$0xf]
        %v2055 = vld [vmem:[%s826 + $0x2c] sm:$0xf]
        %v2056 = vld [vmem:[%s826 + $0x30] sm:$0xf]
        %v2057 = vld [vmem:[%s826 + $0x34] sm:$0xf]
        %v2058 = vld [vmem:[%s826 + $0x38] sm:$0xf]
        %v2059 = vld [vmem:[%s826 + $0x3c] sm:$0xf]
        %v2060 = vpack.c.bf16 %v2042, %v2041
        %v2061 = vpack.c.bf16 %v2043, %v2043
        %v2062 = vld [vmem:[%s829] sm:$0x1]
        %v2064 = vlaneseq
        %v2065 = vshrl.u32 %v2064, 7
        %v2066 = vsub.s32 0, %v2065
        %v2067 = vrot.slane %v2062, %v2066
        %v2085 = vunpack.c.l.b16 %v2044
        %v2086 = vunpack.c.l.b16 %v2045
        %v2087 = vunpack.c.l.b16 %v2046
        %v2088 = vunpack.c.l.b16 %v2047
        %v2089 = vunpack.c.l.b16 %v2048
        %v2090 = vunpack.c.l.b16 %v2049
        %v2091 = vunpack.c.l.b16 %v2050
        %v2092 = vunpack.c.l.b16 %v2051
        %v2093 = vunpack.c.l.b16 %v2052
        %v2094 = vunpack.c.l.b16 %v2053
        %v2095 = vunpack.c.l.b16 %v2054
        %v2096 = vunpack.c.l.b16 %v2055
        %v2097 = vunpack.c.l.b16 %v2056
        %v2098 = vunpack.c.l.b16 %v2057
        %v2099 = vunpack.c.l.b16 %v2058
        %v2100 = vunpack.c.l.b16 %v2059
        %v2101 = vpack.c.b16 %v2086, %v2085
        %v2102 = vpack.c.b16 %v2088, %v2087
        %v2103 = vpack.c.b16 %v2090, %v2089
        %v2104 = vpack.c.b16 %v2092, %v2091
        %v2105 = vpack.c.b16 %v2094, %v2093
        %v2106 = vpack.c.b16 %v2096, %v2095
        %v2107 = vpack.c.b16 %v2098, %v2097
        %v2108 = vpack.c.b16 %v2100, %v2099
        %2117 = vmatprep.subr.bf16.mxu0 0
        %2118 = vmatpush1.bf16.msra.mxu0 %v2101
        %2119 = vmatprep.subr.bf16.mxu0 0
        %2120 = vmatpush1.bf16.msra.mxu0 %v2102
        %2121 = vmatprep.subr.bf16.mxu0 0
        %2122 = vmatpush1.bf16.msra.mxu0 %v2103
        %2123 = vmatprep.subr.bf16.mxu0 0
        %2124 = vmatpush1.bf16.msra.mxu0 %v2104
        %2125 = vmatprep.subr.bf16.mxu0 0
        %2126 = vmatpush1.bf16.msra.mxu0 %v2105
        %2127 = vmatprep.subr.bf16.mxu0 0
        %2128 = vmatpush1.bf16.msra.mxu0 %v2106
        %2129 = vmatprep.subr.bf16.mxu0 0
        %2130 = vmatpush1.bf16.msra.mxu0 %v2107
        %2131 = vmatprep.subr.bf16.mxu0 0
        %2132 = vmatpush1.bf16.msra.mxu0 %v2108
        %2133 = vmatprep.subr.bf16.mxu0 0
        %2134 = vmatpush1.bf16.msra.mxu0 0
        %2135 = vmatprep.subr.bf16.mxu0 0
        %2136 = vmatpush1.bf16.msra.mxu0 0
        %2137 = vmatprep.subr.bf16.mxu0 0
        %2138 = vmatpush1.bf16.msra.mxu0 0
        %2139 = vmatprep.subr.bf16.mxu0 0
        %2140 = vmatpush1.bf16.msra.mxu0 0
        %2141 = vmatprep.subr.bf16.mxu0 0
        %2142 = vmatpush1.bf16.msra.mxu0 0
        %2143 = vmatprep.subr.bf16.mxu0 0
        %2144 = vmatpush1.bf16.msra.mxu0 0
        %2145 = vmatprep.subr.bf16.mxu0 0
        %2146 = vmatpush1.bf16.msra.mxu0 0
        %2147 = vmatprep.subr.bf16.mxu0 0
        %2148 = vmatpush1.bf16.msra.mxu0 0
        %2149 = vmatprep.mubr.bf16.mxu0 0
        %2150 = vmatmul.mubr.bf16.gmra.mrb[0].mxu0 %v2060
        %v2151 = vpop.f32.mrb[0].mxu0
        %v2152 = vadd.f32 %v2067, %v2151
        %v2153 = vpop.f32.mrb[0].mxu0
        %v2154 = vpop.f32.mrb[0].mxu0
        %v2155 = vadd.f32 %v2067, %v2154
        %v2156 = vpop.f32.mrb[0].mxu0
        %2157 = vmatprep.mubr.bf16.mxu0 0
        %2158 = vmatmul.mubr.bf16.gmra.mrb[0].mxu0 %v2061
        %v2159 = vpop.f32.mrb[0].mxu0
        %v2160 = vadd.f32 %v2067, %v2159
        %v2161 = vpop.f32.mrb[0].mxu0
        %v2162 = vpop.f32.mrb[0].mxu0
        %v2163 = vpop.f32.mrb[0].mxu0
        %2164 = vdwg.mxu0
        %v2165 = vld [vmem:[%s832] sm:$0x1]
        %v2167 = vlaneseq
        %v2168 = vshrl.u32 %v2167, 7
        %v2169 = vsub.s32 0, %v2168
        %v2170 = vrot.slane %v2165, %v2169
        %v2172 = vmul.f32 %v2152, %v2170
        %v2173 = vmul.f32 %v2155, %v2170
        %v2174 = vmul.f32 %v2160, %v2170
        %v2175 = vadd.f32 %v1888, %v2172
        %v2176 = vadd.f32 %v1889, %v2173
        %v2177 = vadd.f32 %v1890, %v2174
        %2178 = vst.msk [vmem:[#allocation2] sm:$0xff] %vm940, %v2175
        %2179 = vst.msk [vmem:[#allocation2 + $0x8] sm:$0xff] %vm940, %v2176
        %2180 = vst.msk [vmem:[#allocation2 + $0x10] sm:$0x1] %vm947, %v2177
        %p2181 = scmp.eq.s32.totalorder %s38, 1
        // Predicated region
        $region101: #{dinov2_backbone_forward.1} parent=95 // pred_check
          %p2182 = pneg %p2181
        $region102: #{dinov2_backbone_forward.1} parent=95 // pred_check_branch
          %2184 = sbr.rel (%p2182) target = $region104
        $region103: #{dinov2_backbone_forward.1} parent=95 // pred_region
          %v2185 = vld [vmem:[%s17] sm:$0x1]
          %v2186 = vld [vmem:[%s18] sm:$0x1]
          %v2187 = vsel %vm940, %v2175, 0.0
          %2188 = vadd.xlane.f32.xlu0 %v2187
          %v2189 = vpop.xlane.xlu0 %2188
          %v2190 = vsel %vm940, %v2176, 0.0
          %2191 = vadd.xlane.f32.xlu0 %v2190
          %v2192 = vpop.xlane.xlu0 %2191
          %v2193 = vsel %vm947, %v2177, 0.0
          %2194 = vadd.xlane.f32.xlu0 %v2193
          %v2195 = vpop.xlane.xlu0 %2194
          %v2196 = vmul.f32 %v2189, %v951
          %v2197 = vmul.f32 %v2192, %v951
          %v2198 = vmul.f32 %v2195, %v951
          %v2199 = vsub.f32 %v2175, %v2196
          %v2200 = vsub.f32 %v2176, %v2197
          %v2201 = vsub.f32 %v2177, %v2198
          %v2202 = vmul.f32 %v2199, %v2199
          %v2203 = vmul.f32 %v2200, %v2200
          %v2204 = vmul.f32 %v2201, %v2201
          %v2205 = vsel %vm940, %v2202, 0.0
          %2206 = vadd.xlane.f32.xlu0 %v2205
          %v2207 = vpop.xlane.xlu0 %2206
          %v2208 = vsel %vm940, %v2203, 0.0
          %2209 = vadd.xlane.f32.xlu0 %v2208
          %v2210 = vpop.xlane.xlu0 %2209
          %v2211 = vsel %vm947, %v2204, 0.0
          %2212 = vadd.xlane.f32.xlu0 %v2211
          %v2213 = vpop.xlane.xlu0 %2212
          %v2214 = vmul.f32 %v2207, %v951
          %v2215 = vmul.f32 %v2210, %v951
          %v2216 = vmul.f32 %v2213, %v951
          %v2217 = vadd.f32 %v2214, 1e-06
          %v2218 = vadd.f32 %v2215, 1e-06
          %v2219 = vadd.f32 %v2216, 1e-06
          %v2220 = vrsqrt.pop %v2217
          %v2221 = vrsqrt.pop %v2218
          %v2222 = vrsqrt.pop %v2219
          %v2223 = vmul.f32 %v2199, %v2220
          %v2224 = vmul.f32 %v2200, %v2221
          %v2225 = vmul.f32 %v2201, %v2222
          %v2227 = vlaneseq
          %v2228 = vshrl.u32 %v2227, 7
          %v2229 = vsub.s32 0, %v2228
          %v2230 = vrot.slane %v2185, %v2229
          %v2232 = vmul.f32 %v2223, %v2230
          %v2233 = vmul.f32 %v2224, %v2230
          %v2234 = vmul.f32 %v2225, %v2230
          %v2236 = vlaneseq
          %v2237 = vshrl.u32 %v2236, 7
          %v2238 = vsub.s32 0, %v2237
          %v2239 = vrot.slane %v2186, %v2238
          %v2241 = vadd.f32 %v2232, %v2239
          %v2242 = vadd.f32 %v2233, %v2239
          %v2243 = vadd.f32 %v2234, %v2239
          %vm2244 = vcmask 261121
          %2245 = vst.msk [vmem:[%s777 - $0x1] sm:$0xfe] %vm2244, %v2241
          %2246 = vst.msk [vmem:[%s777 + $0x7] sm:$0xff] %vm940, %v2242
          %2247 = vst.msk [vmem:[%s777 + $0xf] sm:$0x1] %vm947, %v2243
        $region104: #{dinov2_backbone_forward.1} parent=95 // pred_fallthru
          _
        %s2248 = sand.u32 %s527, 1
        %s2249 = scalar_lea.sflag [#allocation4], %s2248
        %s2250 = sand.u32 %s527, 1
        %s2251 = smul.addr %s2250, 16
        %s2252 = scalar_lea.vmem [#allocation3], %s2251
        // Predicated region
        $region105: #{dinov2_backbone_forward.1} parent=95 // pred_check
          %p2253 = pneg %p537
        $region106: #{dinov2_backbone_forward.1} parent=95 // pred_check_branch
          %2255 = sbr.rel (%p2253) target = $region108
        $region107: #{dinov2_backbone_forward.1} parent=95 // pred_region
          %s2257 = ssub.s32 256, 256
          %2258 = vsyncadd %s2249, %s2257
          %s2259 = smul.addr %s37, 2
          %s2260 = smul.addr %s2259, 128
          %s2261 = scalar_lea.hbm %s19, %s2260
          %s2262 = sshll.u32 %s2252, 4
          %s2263 = int_to_ptr.vmem [resolvable:$true] %s2262
          %2268 = dma.vmem_to_hbm [thread:$0]  %s2263, 256, %s2261, %s2249, 128, 128, 8
        $region108: #{dinov2_backbone_forward.1} parent=95 // pred_fallthru
          _
      $region96: #{dinov2_backbone_forward.1} parent=5 // pred_fallthru
        _
      %p2269 = scmp.le.s32.totalorder 2, %s28
      // Predicated region
      $region109: #{dinov2_backbone_forward.1} parent=5 // pred_check
        %p2270 = pneg %p2269
      $region110: #{dinov2_backbone_forward.1} parent=5 // pred_check_branch
        %2272 = sbr.rel (%p2270) target = $region112
      $region111: #{dinov2_backbone_forward.1} parent=5 // pred_region
        %s2273 = ssub.s32 %s28, 2
        // Predicated region
        $region113: #{dinov2_backbone_forward.1} parent=111 // pred_check
          %p2274 = pneg %p543
        $region114: #{dinov2_backbone_forward.1} parent=111 // pred_check_branch
          %2276 = sbr.rel (%p2274) target = $region116
        $region115: #{dinov2_backbone_forward.1} parent=111 // pred_region
          %s2277 = sand.u32 %s528, 1
          %s2278 = scalar_lea.sflag [#allocation4], %s2277
          %s2279 = sand.u32 %s528, 1
          %s2280 = smul.addr %s2279, 16
          %s2281 = scalar_lea.vmem [#allocation3], %s2280
          %2282 = dma.done %s2278, 256
        $region116: #{dinov2_backbone_forward.1} parent=111 // pred_fallthru
          _
      $region112: #{dinov2_backbone_forward.1} parent=5 // pred_fallthru
        _
    $region6: #{dinov2_backbone_forward.1} parent=1 // loop_footer
      %s32 = sadd.s32 1, %s28
    $region7: #{dinov2_backbone_forward.1} parent=1 // loop_footer_branch
      %27 = sbr.rel target = $region3
    $region8: #{dinov2_backbone_forward.1} parent=1 // loop_exit
      _
    %2283 = vsyncpa [#allocation4], 1
    %s2284 = scalar_lea.sflag [#allocation4], 1
    %2285 = vsyncpa %s2284, 1

</llo_original>
